<compile_context>
chip_gen: v5e
topology: v5e:2x2
jax: 0.10.0
libtpu: 0.0.40
codegen_flags: <defaults>
</compile_context>

<pallas_src>
import functools

import jax
import jax.numpy as jnp
from jax.experimental import pallas as pl
from jax.experimental.pallas import tpu as pltpu


# ----------------------------- in-kernel math helpers -----------------------------

def _erf(x):
    # Abramowitz & Stegun 7.1.26, |err| < 1.5e-7 (float32-exact for GELU purposes).
    a1, a2, a3, a4, a5 = 0.254829592, -0.284496736, 1.421413741, -1.453152027, 1.061405429
    p = 0.3275911
    ax = jnp.abs(x)
    t = 1.0 / (1.0 + p * ax)
    poly = ((((a5 * t + a4) * t + a3) * t + a2) * t + a1) * t
    y = 1.0 - poly * jnp.exp(-ax * ax)
    return jnp.where(x >= 0, y, -y)


def _gelu_exact(x):
    # matches torch.nn.GELU() default (erf-based)
    return 0.5 * x * (1.0 + _erf(x * 0.7071067811865476))


def _mxu_dot(a, b_bf16):
    # bf16 operands on the MXU, f32 accumulation.  Weights are pre-cast to bf16 in the
    # wrapper, so only the activation operand is converted here.
    return jnp.dot(a.astype(jnp.bfloat16), b_bf16, preferred_element_type=jnp.float32)


def _matmul_nt_f32(a, b):
    # a @ b.T without materializing a transpose; tiny (B, P) tiles -> keep f32 precision.
    return jax.lax.dot_general(a, b, (((1,), (1,)), ((), ())),
                               preferred_element_type=jnp.float32)


def _projection_head(x_f32, w_proj, b_proj, w_fc, b_fc, gamma, beta, eps=1e-5):
    # Linear -> GELU -> Linear -> (dropout = id) -> residual -> LayerNorm (f32 math)
    prj = _mxu_dot(x_f32, w_proj) + b_proj
    h = _gelu_exact(prj)
    h = _mxu_dot(h, w_fc) + b_fc
    h = h + prj
    mu = jnp.mean(h, axis=-1, keepdims=True)
    var = jnp.mean((h - mu) ** 2, axis=-1, keepdims=True)
    h = (h - mu) * jax.lax.rsqrt(var + eps)
    return h * gamma + beta


# --------------------------- kernel A: stream + language head -----------------------

def pool_and_lang_kernel(l_pool_ref, a_hid_ref,
                         l_wp_ref, l_bp_ref, l_wf_ref, l_bf_ref, l_g_ref, l_b_ref,
                         a_pool_ref, l_emb_ref, *, t_true):
    t = pl.program_id(1)

    @pl.when(t == 0)
    def _():
        a_pool_ref[...] = jnp.zeros_like(a_pool_ref)
        # Language head hoisted to step 0: no dependency on the pooled audio, so it
        # overlaps the audio stream DMA and is sharded across the batch-parallel axis.
        l_emb_ref[...] = _projection_head(l_pool_ref[...],
                                          l_wp_ref[...], l_bp_ref[...],
                                          l_wf_ref[...], l_bf_ref[...],
                                          l_g_ref[...], l_b_ref[...])

    # Streaming AdaptiveAvgPool1d(1): fused-convert f32 accumulation of the time-sum
    # (no f32 copy of the (bb, tc, H) chunk is materialized).
    a_pool_ref[...] += jnp.sum(a_hid_ref[...], axis=1, dtype=jnp.float32)

    @pl.when(t == pl.num_programs(1) - 1)
    def _():
        a_pool_ref[...] *= (1.0 / t_true)          # divide by the true (un-padded) T


# --------------------------- kernel B: audio head + contrastive ----------------------

def head_and_loss_kernel(l_emb_ref, a_pool_ref,
                         a_wp_ref, a_bp_ref, a_wf_ref, a_bf_ref, a_g_ref, a_b_ref,
                         loss_ref, logits_ref, a_emb_ref):
    l_emb = l_emb_ref[...]
    a_emb = _projection_head(a_pool_ref[...],
                             a_wp_ref[...], a_bp_ref[...],
                             a_wf_ref[...], a_bf_ref[...],
                             a_g_ref[...], a_b_ref[...])

    logits = _matmul_nt_f32(l_emb, a_emb)          # (B, B) = l @ a.T
    a_sim = _matmul_nt_f32(a_emb, a_emb)           # (B, B)
    l_sim = _matmul_nt_f32(l_emb, l_emb)           # (B, B)
    targets = jax.nn.softmax((a_sim + l_sim) * 0.5, axis=-1)

    logsm_row = jax.nn.log_softmax(logits, axis=-1)
    logsm_col = jax.nn.log_softmax(logits.T, axis=-1)

    b = logits.shape[0]
    loss_a_total = jnp.sum(-targets * logsm_row)        # == sum_i loss_a[i]
    loss_t_total = jnp.sum(-targets.T * logsm_col)      # == sum_i loss_t[i]
    # mean_i((loss_a[i] + loss_t[i]) / 2) == (sum loss_a + sum loss_t) / (2B)
    loss_ref[0] = 0.5 * (loss_a_total + loss_t_total) / b

    logits_ref[...] = logits
    a_emb_ref[...] = a_emb


# ----------------------------------- wrapper ----------------------------------------

def _round_up(x, m):
    return ((x + m - 1) // m) * m


def _vmem_capacity_bytes():
    try:
        return int(pltpu.get_tpu_info().vmem_capacity_bytes)
    except Exception:
        return 64 * 1024 * 1024        # conservative default (v7x per-TensorCore VMEM)


def _pick_time_chunk(bb, t_len, hidden, itemsize, vmem_budget_bytes, resident_bytes):
    """Largest time chunk whose double-buffered audio tile fits the VMEM budget."""
    align = 16 if itemsize <= 2 else 8           # bf16 packs 16 sublanes per vreg
    audio_budget = max(2 << 20, vmem_budget_bytes - resident_bytes)
    tile_budget = min(24 << 20, audio_budget // 2)   # per tile; x2 for double buffering
    per_frame = max(1, bb * hidden * itemsize)
    tc = tile_budget // per_frame
    tc = max(align, (tc // align) * align)
    return int(min(tc, _round_up(max(t_len, 1), align)))


def _stream_pool_and_lang(l_pooler, a_hidden, lp, *, bb, tc, t_true, vmem_limit,
                          single_buffer_residents):
    """Kernel A launch: batch-parallel, time-chunked pooling + hoisted language head."""
    B, H = l_pooler.shape
    P = lp["l_wp"].shape[1]
    t_pad = a_hidden.shape[1]
    n_b = B // bb
    n_t = t_pad // tc
    itemsize = jnp.dtype(a_hidden.dtype).itemsize

    def const_spec(shape):
        # DMA'd once and held resident across the whole grid; single-buffered when supported.
        if single_buffer_residents:
            return pl.BlockSpec(shape, lambda b, t: (0, 0), pipeline_mode=pl.Buffered(1))
        return pl.BlockSpec(shape, lambda b, t: (0, 0))

    in_specs = [
        pl.BlockSpec((bb, H), lambda b, t: (b, 0)),         # l_pooler (per batch shard)
        pl.BlockSpec((bb, tc, H), lambda b, t: (b, t, 0)),   # audio chunk (pipelined)
        const_spec(lp["l_wp"].shape), const_spec(lp["l_bp"].shape),
        const_spec(lp["l_wf"].shape), const_spec(lp["l_bf"].shape),
        const_spec(lp["l_g"].shape), const_spec(lp["l_b"].shape),
    ]
    out_shapes = (
        jax.ShapeDtypeStruct((B, H), jnp.float32),           # pooled audio mean
        jax.ShapeDtypeStruct((B, P), jnp.float32),           # l_last_hidden_states
    )
    out_specs = (
        pl.BlockSpec((bb, H), lambda b, t: (b, 0)),
        pl.BlockSpec((bb, P), lambda b, t: (b, 0)),
    )

    # roofline hint: dominated by streaming a_hidden from HBM
    bytes_accessed = int(a_hidden.size * itemsize + l_pooler.size * 4
                         + sum(int(v.size) * jnp.dtype(v.dtype).itemsize for v in lp.values())
                         + (B * H + B * P) * 4)
    flops = int(2 * B * t_pad * H + 2 * (B * H * P + B * P * P))
    transcendentals = int(B * P)

    kernel = functools.partial(pool_and_lang_kernel, t_true=t_true)
    return pl.pallas_call(
        kernel,
        out_shape=out_shapes,
        grid_spec=pltpu.PrefetchScalarGridSpec(
            num_scalar_prefetch=0,
            grid=(n_b, n_t),
            in_specs=in_specs,
            out_specs=out_specs,
        ),
        compiler_params=pltpu.CompilerParams(
            dimension_semantics=("parallel", "arbitrary"),   # batch shards // TCs; time is a reduction
            vmem_limit_bytes=int(vmem_limit),
        ),
        cost_estimate=pl.CostEstimate(
            flops=flops, transcendentals=transcendentals, bytes_accessed=bytes_accessed),
    )(l_pooler, a_hidden,
      lp["l_wp"], lp["l_bp"], lp["l_wf"], lp["l_bf"], lp["l_g"], lp["l_b"])


def _head_and_loss(l_emb, a_pool, ap):
    """Kernel B launch: audio projection head + contrastive logits/targets/loss."""
    B, P = l_emb.shape
    H = a_pool.shape[1]

    def spec(shape):
        return pl.BlockSpec(shape, lambda i: (0, 0))

    out_shapes = (
        jax.ShapeDtypeStruct((1,), jnp.float32),             # loss (scalar, SMEM)
        jax.ShapeDtypeStruct((B, B), jnp.float32),           # logits
        jax.ShapeDtypeStruct((B, P), jnp.float32),           # a_last_hidden_states
    )
    out_specs = (
        pl.BlockSpec(memory_space=pltpu.MemorySpace.SMEM),
        spec((B, B)),
        spec((B, P)),
    )

    return pl.pallas_call(
        head_and_loss_kernel,
        out_shape=out_shapes,
        grid_spec=pltpu.PrefetchScalarGridSpec(
            num_scalar_prefetch=0,
            grid=(1,),
            in_specs=[spec((B, P)), spec((B, H)),
                      spec(ap["a_wp"].shape), spec(ap["a_bp"].shape),
                      spec(ap["a_wf"].shape), spec(ap["a_bf"].shape),
                      spec(ap["a_g"].shape), spec(ap["a_b"].shape)],
            out_specs=out_specs,
        ),
        compiler_params=pltpu.CompilerParams(dimension_semantics=("arbitrary",)),
    )(l_emb, a_pool,
      ap["a_wp"], ap["a_bp"], ap["a_wf"], ap["a_bf"], ap["a_g"], ap["a_b"])


def clap_forward(l_pooler, a_hidden, params, *, time_chunk=None,
                 audio_dtype=jnp.bfloat16):
    """Returns (loss, logits, l_embeds, a_embeds), matching CLAPOutput fields."""
    B, H = l_pooler.shape
    Bt, T, Ht = a_hidden.shape
    assert Bt == B and Ht == H
    P = params["l_wp"].shape[1]

    l_pooler = l_pooler.astype(jnp.float32)
    # Stream the (B, T, H) audio tensor in bf16: halves the dominant HBM traffic.
    a_hidden = a_hidden.astype(audio_dtype)
    itemsize = jnp.dtype(audio_dtype).itemsize
    align = 16 if itemsize <= 2 else 8

    # Pre-cast the matmul weights to bf16 (MXU-native, halves weight DMA/VMEM);
    # biases / LayerNorm params stay f32.
    lp = {
        "l_wp": params["l_wp"].astype(jnp.bfloat16), "l_bp": params["l_bp"].astype(jnp.float32),
        "l_wf": params["l_wf"].astype(jnp.bfloat16), "l_bf": params["l_bf"].astype(jnp.float32),
        "l_g": params["l_g"].astype(jnp.float32), "l_b": params["l_b"].astype(jnp.float32),
    }
    ap = {
        "a_wp": params["a_wp"].astype(jnp.bfloat16), "a_bp": params["a_bp"].astype(jnp.float32),
        "a_wf": params["a_wf"].astype(jnp.bfloat16), "a_bf": params["a_bf"].astype(jnp.float32),
        "a_g": params["a_g"].astype(jnp.float32), "a_b": params["a_b"].astype(jnp.float32),
    }

    # Batch sharding of the streaming pool: 2 shards -> one per TensorCore on v7x megacore.
    bb = B // 2 if (B % 16 == 0) else B

    # Generation-aware VMEM budget & time-chunk size (v7x: 64 MiB, v5e/v6e: 128 MiB).
    vmem_cap = _vmem_capacity_bytes()
    vmem_budget = (vmem_cap * 3) // 4
    param_bytes = 2 * sum(int(v.size) * jnp.dtype(v.dtype).itemsize for v in lp.values())
    io_bytes = 2 * (2 * bb * H + bb * P) * 4
    resident_bytes = param_bytes + io_bytes

    if time_chunk is not None:
        # Validate/round a user-supplied chunk to the sublane multiple (16 for bf16).
        tc = max(align, _round_up(int(time_chunk), align))
    else:
        tc = _pick_time_chunk(bb, T, H, itemsize, vmem_budget, resident_bytes)
    tc = min(tc, _round_up(T, align))

    t_pad = _round_up(T, tc)
    if t_pad != T:
        # zero-padding the time axis is exact: we accumulate a sum and divide by true T
        a_hidden = jnp.pad(a_hidden, ((0, 0), (0, t_pad - T), (0, 0)))

    try:
        a_pool, l_emb = _stream_pool_and_lang(
            l_pooler, a_hidden, lp, bb=bb, tc=tc, t_true=float(T),
            vmem_limit=vmem_budget, single_buffer_residents=True)
    except Exception:
        # TODO(synk): pipeline_mode=pl.Buffered(1) unsupported on this JAX build; fall back to
        #             default double buffering for the resident weights.
        a_pool, l_emb = _stream_pool_and_lang(
            l_pooler, a_hidden, lp, bb=bb, tc=tc, t_true=float(T),
            vmem_limit=vmem_budget, single_buffer_residents=False)

    loss, logits, a_emb = _head_and_loss(l_emb, a_pool, ap)
    return loss[0], logits, l_emb, a_emb


def init_params(key, hidden_size, projection_size):
    """Deterministic ProjectionHead params for language (l_) and audio (a_) projectors."""
    ks = jax.random.split(key, 8)

    def lin(k, fan_in, fan_out):
        return 0.02 * jax.random.normal(k, (fan_in, fan_out), jnp.float32)

    H, P = hidden_size, projection_size
    return {
        # language projector
        "l_wp": lin(ks[0], H, P), "l_bp": jnp.zeros((1, P), jnp.float32),
        "l_wf": lin(ks[1], P, P), "l_bf": jnp.zeros((1, P), jnp.float32),
        "l_g": jnp.ones((1, P), jnp.float32), "l_b": jnp.zeros((1, P), jnp.float32),
        # audio projector
        "a_wp": lin(ks[2], H, P), "a_bp": jnp.zeros((1, P), jnp.float32),
        "a_wf": lin(ks[3], P, P), "a_bf": jnp.zeros((1, P), jnp.float32),
        "a_g": jnp.ones((1, P), jnp.float32), "a_b": jnp.zeros((1, P), jnp.float32),
    }


if __name__ == "__main__":
    # small but lane/sublane-aligned shapes (H, P multiples of 128; B multiple of 16 so the
    # batch-parallel axis has 2 shards and the explicit time_chunk gives 4 pipelined steps)
    B, T, H, P = 16, 64, 128, 128   # batch, audio frames, hidden_size, projection_size
    TC = 16                         # time chunk -> grid (2 batch shards, 4 time steps)

    key = jax.random.PRNGKey(0)
    k_lp, k_ah, k_par = jax.random.split(key, 3)

    # stand-ins for the pretrained encoder outputs (see TODO(synk) above)
    l_pooler_output = jax.random.normal(k_lp, (B, H), jnp.float32)     # BERT pooler_output
    a_last_hidden = jax.random.normal(k_ah, (B, T, H), jnp.float32)    # Wav2Vec2 last_hidden_state

    params = init_params(k_par, H, P)

    loss, logits, l_emb, a_emb = jax.block_until_ready(
        clap_forward(l_pooler_output, a_last_hidden, params, time_chunk=TC))

    assert logits.shape == (B, B)
    assert l_emb.shape == (B, P) and a_emb.shape == (B, P)
    assert bool(jnp.isfinite(loss))
    print("KERNEL_OK")
</pallas_src>

<mosaic_0001>
module attributes {stable_mosaic.version = 11 : i64} {
  func.func @pool_and_lang_kernel(%arg0: i32, %arg1: i32, %arg2: memref<8x128xf32, #tpu.memory_space<vmem>>, %arg3: memref<8x16x128xbf16, #tpu.memory_space<vmem>>, %arg4: memref<128x128xbf16, #tpu.memory_space<vmem>>, %arg5: memref<1x128xf32, #tpu.memory_space<vmem>>, %arg6: memref<128x128xbf16, #tpu.memory_space<vmem>>, %arg7: memref<1x128xf32, #tpu.memory_space<vmem>>, %arg8: memref<1x128xf32, #tpu.memory_space<vmem>>, %arg9: memref<1x128xf32, #tpu.memory_space<vmem>>, %arg10: memref<8x128xf32, #tpu.memory_space<vmem>>, %arg11: memref<8x128xf32, #tpu.memory_space<vmem>>) attributes {dimension_semantics = [#tpu.dimension_semantics<parallel>, #tpu.dimension_semantics<arbitrary>], iteration_bounds = array<i64: 2, 4>, scalar_prefetch = 0 : i64, scratch_operands = 0 : i64, tpu.core_type = #tpu.core_type<tc>, window_params = [{transform_indices = @transform_0, window_bounds = array<i64: 8, 128>}, {transform_indices = @transform_1, window_bounds = array<i64: 8, 16, 128>}, {pipeline_mode = #tpu.pipeline_mode<synchronous>, transform_indices = @transform_2, window_bounds = array<i64: 128, 128>}, {pipeline_mode = #tpu.pipeline_mode<synchronous>, transform_indices = @transform_3, window_bounds = array<i64: 1, 128>}, {pipeline_mode = #tpu.pipeline_mode<synchronous>, transform_indices = @transform_4, window_bounds = array<i64: 128, 128>}, {pipeline_mode = #tpu.pipeline_mode<synchronous>, transform_indices = @transform_5, window_bounds = array<i64: 1, 128>}, {pipeline_mode = #tpu.pipeline_mode<synchronous>, transform_indices = @transform_6, window_bounds = array<i64: 1, 128>}, {pipeline_mode = #tpu.pipeline_mode<synchronous>, transform_indices = @transform_7, window_bounds = array<i64: 1, 128>}, {transform_indices = @transform_8, window_bounds = array<i64: 8, 128>}, {transform_indices = @transform_9, window_bounds = array<i64: 8, 128>}]} {
    %c0_i32 = arith.constant 0 : i32
    %0 = arith.cmpi eq, %arg1, %c0_i32 : i32
    %1 = arith.extui %0 : i1 to i32
    %c0_i32_0 = arith.constant 0 : i32
    %2 = arith.cmpi ne, %1, %c0_i32_0 : i32
    scf.if %2 {
      %cst_8 = arith.constant 0.000000e+00 : f32
      %12 = vector.broadcast %cst_8 : f32 to vector<8x128xf32>
      %c0_9 = arith.constant 0 : index
      %c0_10 = arith.constant 0 : index
      %13 = vector.load %arg10[%c0_9, %c0_10] : memref<8x128xf32, #tpu.memory_space<vmem>>, vector<8x128xf32>
      tpu.vector_store %arg10[%c0_9, %c0_10], %12 {strides = array<i32>} : memref<8x128xf32, #tpu.memory_space<vmem>>, vector<8x128xf32>,
      %c0_11 = arith.constant 0 : index
      %c0_12 = arith.constant 0 : index
      %14 = vector.load %arg2[%c0_11, %c0_12] : memref<8x128xf32, #tpu.memory_space<vmem>>, vector<8x128xf32>
      %c0_13 = arith.constant 0 : index
      %c0_14 = arith.constant 0 : index
      %15 = vector.load %arg4[%c0_13, %c0_14] : memref<128x128xbf16, #tpu.memory_space<vmem>>, vector<128x128xbf16>
      %c0_15 = arith.constant 0 : index
      %c0_16 = arith.constant 0 : index
      %16 = vector.load %arg5[%c0_15, %c0_16] : memref<1x128xf32, #tpu.memory_space<vmem>>, vector<1x128xf32>
      %c0_17 = arith.constant 0 : index
      %c0_18 = arith.constant 0 : index
      %17 = vector.load %arg6[%c0_17, %c0_18] : memref<128x128xbf16, #tpu.memory_space<vmem>>, vector<128x128xbf16>
      %c0_19 = arith.constant 0 : index
      %c0_20 = arith.constant 0 : index
      %18 = vector.load %arg7[%c0_19, %c0_20] : memref<1x128xf32, #tpu.memory_space<vmem>>, vector<1x128xf32>
      %c0_21 = arith.constant 0 : index
      %c0_22 = arith.constant 0 : index
      %19 = vector.load %arg8[%c0_21, %c0_22] : memref<1x128xf32, #tpu.memory_space<vmem>>, vector<1x128xf32>
      %c0_23 = arith.constant 0 : index
      %c0_24 = arith.constant 0 : index
      %20 = vector.load %arg9[%c0_23, %c0_24] : memref<1x128xf32, #tpu.memory_space<vmem>>, vector<1x128xf32>
      %21 = arith.truncf %14 : vector<8x128xf32> to vector<8x128xbf16>
      %cst_25 = arith.constant dense<0.000000e+00> : vector<8x128xf32>
      %22 = tpu.matmul %21, %15, %cst_25 {dimension_numbers = #tpu.dot_dimension_numbers<[1], [0], [0], [1], [0, 0, 1, 1], [], []>} : vector<8x128xbf16>, vector<128x128xbf16>, vector<8x128xf32> -> vector<8x128xf32>
      %23 = vector.broadcast %16 : vector<1x128xf32> to vector<8x128xf32>
      %24 = arith.addf %22, %23 : vector<8x128xf32>
      %cst_26 = arith.constant 5.000000e-01 : f32
      %25 = vector.broadcast %cst_26 : f32 to vector<8x128xf32>
      %26 = arith.mulf %25, %24 : vector<8x128xf32>
      %cst_27 = arith.constant 0.707106769 : f32
      %27 = vector.broadcast %cst_27 : f32 to vector<8x128xf32>
      %28 = arith.mulf %24, %27 : vector<8x128xf32>
      %29 = math.absf %28 : vector<8x128xf32>
      %cst_28 = arith.constant 0.327591091 : f32
      %30 = vector.broadcast %cst_28 : f32 to vector<8x128xf32>
      %31 = arith.mulf %30, %29 : vector<8x128xf32>
      %cst_29 = arith.constant 1.000000e+00 : f32
      %32 = vector.broadcast %cst_29 : f32 to vector<8x128xf32>
      %33 = arith.addf %32, %31 : vector<8x128xf32>
      %cst_30 = arith.constant 1.000000e+00 : f32
      %34 = vector.broadcast %cst_30 : f32 to vector<8x128xf32>
      %35 = arith.divf %34, %33 : vector<8x128xf32>
      %cst_31 = arith.constant 1.06140542 : f32
      %36 = vector.broadcast %cst_31 : f32 to vector<8x128xf32>
      %37 = arith.mulf %36, %35 : vector<8x128xf32>
      %cst_32 = arith.constant -1.45315206 : f32
      %38 = vector.broadcast %cst_32 : f32 to vector<8x128xf32>
      %39 = arith.addf %37, %38 : vector<8x128xf32>
      %40 = arith.mulf %39, %35 : vector<8x128xf32>
      %cst_33 = arith.constant 1.42141378 : f32
      %41 = vector.broadcast %cst_33 : f32 to vector<8x128xf32>
      %42 = arith.addf %40, %41 : vector<8x128xf32>
      %43 = arith.mulf %42, %35 : vector<8x128xf32>
      %cst_34 = arith.constant -0.284496725 : f32
      %44 = vector.broadcast %cst_34 : f32 to vector<8x128xf32>
      %45 = arith.addf %43, %44 : vector<8x128xf32>
      %46 = arith.mulf %45, %35 : vector<8x128xf32>
      %cst_35 = arith.constant 0.254829586 : f32
      %47 = vector.broadcast %cst_35 : f32 to vector<8x128xf32>
      %48 = arith.addf %46, %47 : vector<8x128xf32>
      %49 = arith.mulf %48, %35 : vector<8x128xf32>
      %cst_36 = arith.constant 0.000000e+00 : f32
      %50 = vector.broadcast %cst_36 : f32 to vector<8x128xf32>
      %51 = arith.subf %50, %29 : vector<8x128xf32>
      %52 = arith.mulf %51, %29 : vector<8x128xf32>
      %53 = math.exp %52 : vector<8x128xf32>
      %54 = arith.mulf %49, %53 : vector<8x128xf32>
      %cst_37 = arith.constant 1.000000e+00 : f32
      %55 = vector.broadcast %cst_37 : f32 to vector<8x128xf32>
      %56 = arith.subf %55, %54 : vector<8x128xf32>
      %cst_38 = arith.constant 0.000000e+00 : f32
      %57 = vector.broadcast %cst_38 : f32 to vector<8x128xf32>
      %58 = arith.cmpf oge, %28, %57 : vector<8x128xf32>
      %cst_39 = arith.constant 0.000000e+00 : f32
      %59 = vector.broadcast %cst_39 : f32 to vector<8x128xf32>
      %60 = arith.subf %59, %56 : vector<8x128xf32>
      %61 = arith.select %58, %56, %60 : vector<8x128xi1>, vector<8x128xf32>
      %cst_40 = arith.constant 1.000000e+00 : f32
      %62 = vector.broadcast %cst_40 : f32 to vector<8x128xf32>
      %63 = arith.addf %62, %61 : vector<8x128xf32>
      %64 = arith.mulf %26, %63 : vector<8x128xf32>
      %65 = arith.truncf %64 : vector<8x128xf32> to vector<8x128xbf16>
      %cst_41 = arith.constant dense<0.000000e+00> : vector<8x128xf32>
      %66 = tpu.matmul %65, %17, %cst_41 {dimension_numbers = #tpu.dot_dimension_numbers<[1], [0], [0], [1], [0, 0, 1, 1], [], []>} : vector<8x128xbf16>, vector<128x128xbf16>, vector<8x128xf32> -> vector<8x128xf32>
      %67 = vector.broadcast %18 : vector<1x128xf32> to vector<8x128xf32>
      %68 = arith.addf %66, %67 : vector<8x128xf32>
      %69 = arith.addf %68, %24 : vector<8x128xf32>
      %cst_42 = arith.constant dense<0.000000e+00> : vector<8xf32>
      %70 = vector.multi_reduction <add>, %69, %cst_42 [1] : vector<8x128xf32> to vector<8xf32>
      %71 = vector.shape_cast %70 : vector<8xf32> to vector<8x1xf32>
      %cst_43 = arith.constant 1.280000e+02 : f32
      %72 = vector.broadcast %cst_43 : f32 to vector<8x1xf32>
      %73 = arith.divf %71, %72 : vector<8x1xf32>
      %74 = vector.broadcast %73 : vector<8x1xf32> to vector<8x128xf32>
      %75 = arith.subf %69, %74 : vector<8x128xf32>
      %76 = arith.mulf %75, %75 : vector<8x128xf32>
      %cst_44 = arith.constant dense<0.000000e+00> : vector<8xf32>
      %77 = vector.multi_reduction <add>, %76, %cst_44 [1] : vector<8x128xf32> to vector<8xf32>
      %78 = vector.shape_cast %77 : vector<8xf32> to vector<8x1xf32>
      %cst_45 = arith.constant 1.280000e+02 : f32
      %79 = vector.broadcast %cst_45 : f32 to vector<8x1xf32>
      %80 = arith.divf %78, %79 : vector<8x1xf32>
      %81 = vector.broadcast %73 : vector<8x1xf32> to vector<8x128xf32>
      %82 = arith.subf %69, %81 : vector<8x128xf32>
      %cst_46 = arith.constant 9.99999974E-6 : f32
      %83 = vector.broadcast %cst_46 : f32 to vector<8x1xf32>
      %84 = arith.addf %80, %83 : vector<8x1xf32>
      %85 = math.rsqrt %84 : vector<8x1xf32>
      %86 = vector.broadcast %85 : vector<8x1xf32> to vector<8x128xf32>
      %87 = arith.mulf %82, %86 : vector<8x128xf32>
      %88 = vector.broadcast %19 : vector<1x128xf32> to vector<8x128xf32>
      %89 = arith.mulf %87, %88 : vector<8x128xf32>
      %90 = vector.broadcast %20 : vector<1x128xf32> to vector<8x128xf32>
      %91 = arith.addf %89, %90 : vector<8x128xf32>
      %c0_47 = arith.constant 0 : index
      %c0_48 = arith.constant 0 : index
      %92 = vector.load %arg11[%c0_47, %c0_48] : memref<8x128xf32, #tpu.memory_space<vmem>>, vector<8x128xf32>
      tpu.vector_store %arg11[%c0_47, %c0_48], %91 {strides = array<i32>} : memref<8x128xf32, #tpu.memory_space<vmem>>, vector<8x128xf32>,
    } else {
    }
    %c0 = arith.constant 0 : index
    %c0_1 = arith.constant 0 : index
    %3 = vector.load %arg10[%c0, %c0_1] : memref<8x128xf32, #tpu.memory_space<vmem>>, vector<8x128xf32>
    %c0_2 = arith.constant 0 : index
    %c0_3 = arith.constant 0 : index
    %c0_4 = arith.constant 0 : index
    %4 = vector.load %arg3[%c0_2, %c0_3, %c0_4] : memref<8x16x128xbf16, #tpu.memory_space<vmem>>, vector<8x16x128xbf16>
    %5 = arith.extf %4 : vector<8x16x128xbf16> to vector<8x16x128xf32>
    %cst = arith.constant dense<0.000000e+00> : vector<8x128xf32>
    %6 = vector.multi_reduction <add>, %5, %cst [1] : vector<8x16x128xf32> to vector<8x128xf32>
    %7 = arith.addf %3, %6 : vector<8x128xf32>
    %c0_5 = arith.constant 0 : index
    %c0_6 = arith.constant 0 : index
    %8 = vector.load %arg10[%c0_5, %c0_6] : memref<8x128xf32, #tpu.memory_space<vmem>>, vector<8x128xf32>
    tpu.vector_store %arg10[%c0_5, %c0_6], %7 {strides = array<i32>} : memref<8x128xf32, #tpu.memory_space<vmem>>, vector<8x128xf32>,
    %c3_i32 = arith.constant 3 : i32
    %9 = arith.cmpi eq, %arg1, %c3_i32 : i32
    %10 = arith.extui %9 : i1 to i32
    %c0_i32_7 = arith.constant 0 : i32
    %11 = arith.cmpi ne, %10, %c0_i32_7 : i32
    scf.if %11 {
      %c0_8 = arith.constant 0 : index
      %c0_9 = arith.constant 0 : index
      %12 = vector.load %arg10[%c0_8, %c0_9] : memref<8x128xf32, #tpu.memory_space<vmem>>, vector<8x128xf32>
      %cst_10 = arith.constant 1.562500e-02 : f32
      %13 = vector.broadcast %cst_10 : f32 to vector<8x128xf32>
      %14 = arith.mulf %12, %13 : vector<8x128xf32>
      %c0_11 = arith.constant 0 : index
      %c0_12 = arith.constant 0 : index
      %15 = vector.load %arg10[%c0_11, %c0_12] : memref<8x128xf32, #tpu.memory_space<vmem>>, vector<8x128xf32>
      tpu.vector_store %arg10[%c0_11, %c0_12], %14 {strides = array<i32>} : memref<8x128xf32, #tpu.memory_space<vmem>>, vector<8x128xf32>,
    } else {
    }
    return
  }
  func.func @transform_0(%arg0: i32, %arg1: i32) -> (i32, i32) {
    %c0_i32 = arith.constant 0 : i32
    %c0_i32_0 = arith.constant 0 : i32
    return %arg0, %c0_i32 : i32, i32
  }
  func.func @transform_1(%arg0: i32, %arg1: i32) -> (i32, i32, i32) {
    %c0_i32 = arith.constant 0 : i32
    %c0_i32_0 = arith.constant 0 : i32
    return %arg0, %arg1, %c0_i32 : i32, i32, i32
  }
  func.func @transform_2(%arg0: i32, %arg1: i32) -> (i32, i32) {
    %c0_i32 = arith.constant 0 : i32
    %c0_i32_0 = arith.constant 0 : i32
    %c0_i32_1 = arith.constant 0 : i32
    return %c0_i32, %c0_i32_0 : i32, i32
  }
  func.func @transform_3(%arg0: i32, %arg1: i32) -> (i32, i32) {
    %c0_i32 = arith.constant 0 : i32
    %c0_i32_0 = arith.constant 0 : i32
    %c0_i32_1 = arith.constant 0 : i32
    return %c0_i32, %c0_i32_0 : i32, i32
  }
  func.func @transform_4(%arg0: i32, %arg1: i32) -> (i32, i32) {
    %c0_i32 = arith.constant 0 : i32
    %c0_i32_0 = arith.constant 0 : i32
    %c0_i32_1 = arith.constant 0 : i32
    return %c0_i32, %c0_i32_0 : i32, i32
  }
  func.func @transform_5(%arg0: i32, %arg1: i32) -> (i32, i32) {
    %c0_i32 = arith.constant 0 : i32
    %c0_i32_0 = arith.constant 0 : i32
    %c0_i32_1 = arith.constant 0 : i32
    return %c0_i32, %c0_i32_0 : i32, i32
  }
  func.func @transform_6(%arg0: i32, %arg1: i32) -> (i32, i32) {
    %c0_i32 = arith.constant 0 : i32
    %c0_i32_0 = arith.constant 0 : i32
    %c0_i32_1 = arith.constant 0 : i32
    return %c0_i32, %c0_i32_0 : i32, i32
  }
  func.func @transform_7(%arg0: i32, %arg1: i32) -> (i32, i32) {
    %c0_i32 = arith.constant 0 : i32
    %c0_i32_0 = arith.constant 0 : i32
    %c0_i32_1 = arith.constant 0 : i32
    return %c0_i32, %c0_i32_0 : i32, i32
  }
  func.func @transform_8(%arg0: i32, %arg1: i32) -> (i32, i32) {
    %c0_i32 = arith.constant 0 : i32
    %c0_i32_0 = arith.constant 0 : i32
    return %arg0, %c0_i32 : i32, i32
  }
  func.func @transform_9(%arg0: i32, %arg1: i32) -> (i32, i32) {
    %c0_i32 = arith.constant 0 : i32
    %c0_i32_0 = arith.constant 0 : i32
    return %arg0, %c0_i32 : i32, i32
  }
}

module attributes {stable_mosaic.version = 11 : i64} {
  func.func @pool_and_lang_kernel(%arg0: i32, %arg1: i32, %arg2: memref<8x128xf32, #tpu.memory_space<vmem>>, %arg3: memref<8x16x128xbf16, #tpu.memory_space<vmem>>, %arg4: memref<128x128xbf16, #tpu.memory_space<vmem>>, %arg5: memref<1x128xf32, #tpu.memory_space<vmem>>, %arg6: memref<128x128xbf16, #tpu.memory_space<vmem>>, %arg7: memref<1x128xf32, #tpu.memory_space<vmem>>, %arg8: memref<1x128xf32, #tpu.memory_space<vmem>>, %arg9: memref<1x128xf32, #tpu.memory_space<vmem>>, %arg10: memref<8x128xf32, #tpu.memory_space<vmem>>, %arg11: memref<8x128xf32, #tpu.memory_space<vmem>>) attributes {dimension_semantics = [#tpu.dimension_semantics<parallel>, #tpu.dimension_semantics<arbitrary>], iteration_bounds = array<i64: 2, 4>, scalar_prefetch = 0 : i64, scratch_operands = 0 : i64, tpu.core_type = #tpu.core_type<tc>, window_params = [{transform_indices = @transform_0, window_bounds = array<i64: 8, 128>}, {transform_indices = @transform_1, window_bounds = array<i64: 8, 16, 128>}, {pipeline_mode = #tpu.pipeline_mode<synchronous>, transform_indices = @transform_2, window_bounds = array<i64: 128, 128>}, {pipeline_mode = #tpu.pipeline_mode<synchronous>, transform_indices = @transform_3, window_bounds = array<i64: 1, 128>}, {pipeline_mode = #tpu.pipeline_mode<synchronous>, transform_indices = @transform_4, window_bounds = array<i64: 128, 128>}, {pipeline_mode = #tpu.pipeline_mode<synchronous>, transform_indices = @transform_5, window_bounds = array<i64: 1, 128>}, {pipeline_mode = #tpu.pipeline_mode<synchronous>, transform_indices = @transform_6, window_bounds = array<i64: 1, 128>}, {pipeline_mode = #tpu.pipeline_mode<synchronous>, transform_indices = @transform_7, window_bounds = array<i64: 1, 128>}, {transform_indices = @transform_8, window_bounds = array<i64: 8, 128>}, {transform_indices = @transform_9, window_bounds = array<i64: 8, 128>}]} {
    %c0_i32 = arith.constant 0 : i32
    %0 = arith.cmpi eq, %arg1, %c0_i32 : i32
    %1 = arith.extui %0 : i1 to i32
    %c0_i32_0 = arith.constant 0 : i32
    %2 = arith.cmpi ne, %1, %c0_i32_0 : i32
    scf.if %2 {
      %cst_8 = arith.constant 0.000000e+00 : f32
      %12 = vector.broadcast %cst_8 : f32 to vector<8x128xf32>
      %c0_9 = arith.constant 0 : index
      %c0_10 = arith.constant 0 : index
      %13 = vector.load %arg10[%c0_9, %c0_10] : memref<8x128xf32, #tpu.memory_space<vmem>>, vector<8x128xf32>
      tpu.vector_store %arg10[%c0_9, %c0_10], %12 {strides = array<i32>} : memref<8x128xf32, #tpu.memory_space<vmem>>, vector<8x128xf32>,
      %c0_11 = arith.constant 0 : index
      %c0_12 = arith.constant 0 : index
      %14 = vector.load %arg2[%c0_11, %c0_12] : memref<8x128xf32, #tpu.memory_space<vmem>>, vector<8x128xf32>
      %c0_13 = arith.constant 0 : index
      %c0_14 = arith.constant 0 : index
      %15 = vector.load %arg4[%c0_13, %c0_14] : memref<128x128xbf16, #tpu.memory_space<vmem>>, vector<128x128xbf16>
      %c0_15 = arith.constant 0 : index
      %c0_16 = arith.constant 0 : index
      %16 = vector.load %arg5[%c0_15, %c0_16] : memref<1x128xf32, #tpu.memory_space<vmem>>, vector<1x128xf32>
      %c0_17 = arith.constant 0 : index
      %c0_18 = arith.constant 0 : index
      %17 = vector.load %arg6[%c0_17, %c0_18] : memref<128x128xbf16, #tpu.memory_space<vmem>>, vector<128x128xbf16>
      %c0_19 = arith.constant 0 : index
      %c0_20 = arith.constant 0 : index
      %18 = vector.load %arg7[%c0_19, %c0_20] : memref<1x128xf32, #tpu.memory_space<vmem>>, vector<1x128xf32>
      %c0_21 = arith.constant 0 : index
      %c0_22 = arith.constant 0 : index
      %19 = vector.load %arg8[%c0_21, %c0_22] : memref<1x128xf32, #tpu.memory_space<vmem>>, vector<1x128xf32>
      %c0_23 = arith.constant 0 : index
      %c0_24 = arith.constant 0 : index
      %20 = vector.load %arg9[%c0_23, %c0_24] : memref<1x128xf32, #tpu.memory_space<vmem>>, vector<1x128xf32>
      %21 = arith.truncf %14 : vector<8x128xf32> to vector<8x128xbf16>
      %cst_25 = arith.constant dense<0.000000e+00> : vector<8x128xf32>
      %22 = tpu.matmul %21, %15, %cst_25 {dimension_numbers = #tpu.dot_dimension_numbers<[1], [0], [0], [1], [0, 0, 1, 1], [], []>} : vector<8x128xbf16>, vector<128x128xbf16>, vector<8x128xf32> -> vector<8x128xf32>
      %23 = vector.broadcast %16 : vector<1x128xf32> to vector<8x128xf32>
      %24 = arith.addf %22, %23 : vector<8x128xf32>
      %cst_26 = arith.constant 5.000000e-01 : f32
      %25 = vector.broadcast %cst_26 : f32 to vector<8x128xf32>
      %26 = arith.mulf %25, %24 : vector<8x128xf32>
      %cst_27 = arith.constant 0.707106769 : f32
      %27 = vector.broadcast %cst_27 : f32 to vector<8x128xf32>
      %28 = arith.mulf %24, %27 : vector<8x128xf32>
      %29 = math.absf %28 : vector<8x128xf32>
      %cst_28 = arith.constant 0.327591091 : f32
      %30 = vector.broadcast %cst_28 : f32 to vector<8x128xf32>
      %31 = arith.mulf %30, %29 : vector<8x128xf32>
      %cst_29 = arith.constant 1.000000e+00 : f32
      %32 = vector.broadcast %cst_29 : f32 to vector<8x128xf32>
      %33 = arith.addf %32, %31 : vector<8x128xf32>
      %cst_30 = arith.constant 1.000000e+00 : f32
      %34 = vector.broadcast %cst_30 : f32 to vector<8x128xf32>
      %35 = arith.divf %34, %33 : vector<8x128xf32>
      %cst_31 = arith.constant 1.06140542 : f32
      %36 = vector.broadcast %cst_31 : f32 to vector<8x128xf32>
      %37 = arith.mulf %36, %35 : vector<8x128xf32>
      %cst_32 = arith.constant -1.45315206 : f32
      %38 = vector.broadcast %cst_32 : f32 to vector<8x128xf32>
      %39 = arith.addf %37, %38 : vector<8x128xf32>
      %40 = arith.mulf %39, %35 : vector<8x128xf32>
      %cst_33 = arith.constant 1.42141378 : f32
      %41 = vector.broadcast %cst_33 : f32 to vector<8x128xf32>
      %42 = arith.addf %40, %41 : vector<8x128xf32>
      %43 = arith.mulf %42, %35 : vector<8x128xf32>
      %cst_34 = arith.constant -0.284496725 : f32
      %44 = vector.broadcast %cst_34 : f32 to vector<8x128xf32>
      %45 = arith.addf %43, %44 : vector<8x128xf32>
      %46 = arith.mulf %45, %35 : vector<8x128xf32>
      %cst_35 = arith.constant 0.254829586 : f32
      %47 = vector.broadcast %cst_35 : f32 to vector<8x128xf32>
      %48 = arith.addf %46, %47 : vector<8x128xf32>
      %49 = arith.mulf %48, %35 : vector<8x128xf32>
      %cst_36 = arith.constant 0.000000e+00 : f32
      %50 = vector.broadcast %cst_36 : f32 to vector<8x128xf32>
      %51 = arith.subf %50, %29 : vector<8x128xf32>
      %52 = arith.mulf %51, %29 : vector<8x128xf32>
      %53 = math.exp %52 : vector<8x128xf32>
      %54 = arith.mulf %49, %53 : vector<8x128xf32>
      %cst_37 = arith.constant 1.000000e+00 : f32
      %55 = vector.broadcast %cst_37 : f32 to vector<8x128xf32>
      %56 = arith.subf %55, %54 : vector<8x128xf32>
      %cst_38 = arith.constant 0.000000e+00 : f32
      %57 = vector.broadcast %cst_38 : f32 to vector<8x128xf32>
      %58 = arith.cmpf oge, %28, %57 : vector<8x128xf32>
      %cst_39 = arith.constant 0.000000e+00 : f32
      %59 = vector.broadcast %cst_39 : f32 to vector<8x128xf32>
      %60 = arith.subf %59, %56 : vector<8x128xf32>
      %61 = arith.select %58, %56, %60 : vector<8x128xi1>, vector<8x128xf32>
      %cst_40 = arith.constant 1.000000e+00 : f32
      %62 = vector.broadcast %cst_40 : f32 to vector<8x128xf32>
      %63 = arith.addf %62, %61 : vector<8x128xf32>
      %64 = arith.mulf %26, %63 : vector<8x128xf32>
      %65 = arith.truncf %64 : vector<8x128xf32> to vector<8x128xbf16>
      %cst_41 = arith.constant dense<0.000000e+00> : vector<8x128xf32>
      %66 = tpu.matmul %65, %17, %cst_41 {dimension_numbers = #tpu.dot_dimension_numbers<[1], [0], [0], [1], [0, 0, 1, 1], [], []>} : vector<8x128xbf16>, vector<128x128xbf16>, vector<8x128xf32> -> vector<8x128xf32>
      %67 = vector.broadcast %18 : vector<1x128xf32> to vector<8x128xf32>
      %68 = arith.addf %66, %67 : vector<8x128xf32>
      %69 = arith.addf %68, %24 : vector<8x128xf32>
      %cst_42 = arith.constant dense<0.000000e+00> : vector<8xf32>
      %70 = vector.multi_reduction <add>, %69, %cst_42 [1] : vector<8x128xf32> to vector<8xf32>
      %71 = vector.shape_cast %70 : vector<8xf32> to vector<8x1xf32>
      %cst_43 = arith.constant 1.280000e+02 : f32
      %72 = vector.broadcast %cst_43 : f32 to vector<8x1xf32>
      %73 = arith.divf %71, %72 : vector<8x1xf32>
      %74 = vector.broadcast %73 : vector<8x1xf32> to vector<8x128xf32>
      %75 = arith.subf %69, %74 : vector<8x128xf32>
      %76 = arith.mulf %75, %75 : vector<8x128xf32>
      %cst_44 = arith.constant dense<0.000000e+00> : vector<8xf32>
      %77 = vector.multi_reduction <add>, %76, %cst_44 [1] : vector<8x128xf32> to vector<8xf32>
      %78 = vector.shape_cast %77 : vector<8xf32> to vector<8x1xf32>
      %cst_45 = arith.constant 1.280000e+02 : f32
      %79 = vector.broadcast %cst_45 : f32 to vector<8x1xf32>
      %80 = arith.divf %78, %79 : vector<8x1xf32>
      %81 = vector.broadcast %73 : vector<8x1xf32> to vector<8x128xf32>
      %82 = arith.subf %69, %81 : vector<8x128xf32>
      %cst_46 = arith.constant 9.99999974E-6 : f32
      %83 = vector.broadcast %cst_46 : f32 to vector<8x1xf32>
      %84 = arith.addf %80, %83 : vector<8x1xf32>
      %85 = math.rsqrt %84 : vector<8x1xf32>
      %86 = vector.broadcast %85 : vector<8x1xf32> to vector<8x128xf32>
      %87 = arith.mulf %82, %86 : vector<8x128xf32>
      %88 = vector.broadcast %19 : vector<1x128xf32> to vector<8x128xf32>
      %89 = arith.mulf %87, %88 : vector<8x128xf32>
      %90 = vector.broadcast %20 : vector<1x128xf32> to vector<8x128xf32>
      %91 = arith.addf %89, %90 : vector<8x128xf32>
      %c0_47 = arith.constant 0 : index
      %c0_48 = arith.constant 0 : index
      %92 = vector.load %arg11[%c0_47, %c0_48] : memref<8x128xf32, #tpu.memory_space<vmem>>, vector<8x128xf32>
      tpu.vector_store %arg11[%c0_47, %c0_48], %91 {strides = array<i32>} : memref<8x128xf32, #tpu.memory_space<vmem>>, vector<8x128xf32>,
    } else {
    }
    %c0 = arith.constant 0 : index
    %c0_1 = arith.constant 0 : index
    %3 = vector.load %arg10[%c0, %c0_1] : memref<8x128xf32, #tpu.memory_space<vmem>>, vector<8x128xf32>
    %c0_2 = arith.constant 0 : index
    %c0_3 = arith.constant 0 : index
    %c0_4 = arith.constant 0 : index
    %4 = vector.load %arg3[%c0_2, %c0_3, %c0_4] : memref<8x16x128xbf16, #tpu.memory_space<vmem>>, vector<8x16x128xbf16>
    %5 = arith.extf %4 : vector<8x16x128xbf16> to vector<8x16x128xf32>
    %cst = arith.constant dense<0.000000e+00> : vector<8x128xf32>
    %6 = vector.multi_reduction <add>, %5, %cst [1] : vector<8x16x128xf32> to vector<8x128xf32>
    %7 = arith.addf %3, %6 : vector<8x128xf32>
    %c0_5 = arith.constant 0 : index
    %c0_6 = arith.constant 0 : index
    %8 = vector.load %arg10[%c0_5, %c0_6] : memref<8x128xf32, #tpu.memory_space<vmem>>, vector<8x128xf32>
    tpu.vector_store %arg10[%c0_5, %c0_6], %7 {strides = array<i32>} : memref<8x128xf32, #tpu.memory_space<vmem>>, vector<8x128xf32>,
    %c3_i32 = arith.constant 3 : i32
    %9 = arith.cmpi eq, %arg1, %c3_i32 : i32
    %10 = arith.extui %9 : i1 to i32
    %c0_i32_7 = arith.constant 0 : i32
    %11 = arith.cmpi ne, %10, %c0_i32_7 : i32
    scf.if %11 {
      %c0_8 = arith.constant 0 : index
      %c0_9 = arith.constant 0 : index
      %12 = vector.load %arg10[%c0_8, %c0_9] : memref<8x128xf32, #tpu.memory_space<vmem>>, vector<8x128xf32>
      %cst_10 = arith.constant 1.562500e-02 : f32
      %13 = vector.broadcast %cst_10 : f32 to vector<8x128xf32>
      %14 = arith.mulf %12, %13 : vector<8x128xf32>
      %c0_11 = arith.constant 0 : index
      %c0_12 = arith.constant 0 : index
      %15 = vector.load %arg10[%c0_11, %c0_12] : memref<8x128xf32, #tpu.memory_space<vmem>>, vector<8x128xf32>
      tpu.vector_store %arg10[%c0_11, %c0_12], %14 {strides = array<i32>} : memref<8x128xf32, #tpu.memory_space<vmem>>, vector<8x128xf32>,
    } else {
    }
    return
  }
  func.func @transform_0(%arg0: i32, %arg1: i32) -> (i32, i32) {
    %c0_i32 = arith.constant 0 : i32
    %c0_i32_0 = arith.constant 0 : i32
    return %arg0, %c0_i32 : i32, i32
  }
  func.func @transform_1(%arg0: i32, %arg1: i32) -> (i32, i32, i32) {
    %c0_i32 = arith.constant 0 : i32
    %c0_i32_0 = arith.constant 0 : i32
    return %arg0, %arg1, %c0_i32 : i32, i32, i32
  }
  func.func @transform_2(%arg0: i32, %arg1: i32) -> (i32, i32) {
    %c0_i32 = arith.constant 0 : i32
    %c0_i32_0 = arith.constant 0 : i32
    %c0_i32_1 = arith.constant 0 : i32
    return %c0_i32, %c0_i32_0 : i32, i32
  }
  func.func @transform_3(%arg0: i32, %arg1: i32) -> (i32, i32) {
    %c0_i32 = arith.constant 0 : i32
    %c0_i32_0 = arith.constant 0 : i32
    %c0_i32_1 = arith.constant 0 : i32
    return %c0_i32, %c0_i32_0 : i32, i32
  }
  func.func @transform_4(%arg0: i32, %arg1: i32) -> (i32, i32) {
    %c0_i32 = arith.constant 0 : i32
    %c0_i32_0 = arith.constant 0 : i32
    %c0_i32_1 = arith.constant 0 : i32
    return %c0_i32, %c0_i32_0 : i32, i32
  }
  func.func @transform_5(%arg0: i32, %arg1: i32) -> (i32, i32) {
    %c0_i32 = arith.constant 0 : i32
    %c0_i32_0 = arith.constant 0 : i32
    %c0_i32_1 = arith.constant 0 : i32
    return %c0_i32, %c0_i32_0 : i32, i32
  }
  func.func @transform_6(%arg0: i32, %arg1: i32) -> (i32, i32) {
    %c0_i32 = arith.constant 0 : i32
    %c0_i32_0 = arith.constant 0 : i32
    %c0_i32_1 = arith.constant 0 : i32
    return %c0_i32, %c0_i32_0 : i32, i32
  }
  func.func @transform_7(%arg0: i32, %arg1: i32) -> (i32, i32) {
    %c0_i32 = arith.constant 0 : i32
    %c0_i32_0 = arith.constant 0 : i32
    %c0_i32_1 = arith.constant 0 : i32
    return %c0_i32, %c0_i32_0 : i32, i32
  }
  func.func @transform_8(%arg0: i32, %arg1: i32) -> (i32, i32) {
    %c0_i32 = arith.constant 0 : i32
    %c0_i32_0 = arith.constant 0 : i32
    return %arg0, %c0_i32 : i32, i32
  }
  func.func @transform_9(%arg0: i32, %arg1: i32) -> (i32, i32) {
    %c0_i32 = arith.constant 0 : i32
    %c0_i32_0 = arith.constant 0 : i32
    return %arg0, %c0_i32 : i32, i32
  }
}

</mosaic_0001>

<llo_original>
// kernel: tpu_custom_call.1
$region0: #{tpu_custom_call.1}
  #allocation0 [shape = 'u32[]', space=smem, size = 0x4, offset = 0x4, fixed_abs, tag = 'smem constant byte address 0x4 - core index']
  #allocation1 [shape = 'u32[72,128]{1,0:T(1,128)}', space=vmem, size = 0x9000, scoped, tag = 'internal scratch']
  #allocation13 [shape = 's32[]', space=sflag, size = 0x4, offset = 0, fixed_abs, tag = 'sflag constant byte address 0x0 - dummy sync flag']
  %s0 = inlined_call_operand.hbm [shape: f32[16,128], index: 0, kind: input, shape index: {}]
  %s1 = inlined_call_operand.hbm [shape: bf16[16,64,128], index: 1, kind: input, shape index: {}]
  %s2 = inlined_call_operand.hbm [shape: bf16[128,128], index: 2, kind: input, shape index: {}]
  %s3 = inlined_call_operand.vmem [shape: f32[1,128], index: 3, kind: input, shape index: {}]
  %s4 = inlined_call_operand.hbm [shape: bf16[128,128], index: 4, kind: input, shape index: {}]
  %s5 = inlined_call_operand.vmem [shape: f32[1,128], index: 5, kind: input, shape index: {}]
  %s6 = inlined_call_operand.vmem [shape: f32[1,128], index: 6, kind: input, shape index: {}]
  %s7 = inlined_call_operand.vmem [shape: f32[1,128], index: 7, kind: input, shape index: {}]
  %s8 = inlined_call_operand.hbm [shape: f32[16,128], index: 8, kind: output, shape index: {0}]
  %s9 = inlined_call_operand.hbm [shape: f32[16,128], index: 9, kind: output, shape index: {1}]
  %10 = xla_tuple %s8, %s9
  %s11 = sld [smem:[#allocation0]]
  $region97: #{tpu_custom_call.1} parent=0
    _
  %s13 = ssub.s32 1, %s11
  %s14 = scalar_select 0, %s13, %s11
  $region1: #{tpu_custom_call.1} parent=0
    #allocation2 [shape = 'u8[8192]{0}', space=vmem, size = 0x2000, scoped, tag = 'input window, operand 0']
    #allocation3 [shape = 's32[2]{0}', space=sflag, size = 0x8, scoped, tag = 'scoped memory for tpu_custom_call.1']
    #allocation4 [shape = 's32[2]{0}', space=sflag, size = 0x8, scoped, tag = 'scoped memory for tpu_custom_call.1']
    #allocation5 [shape = 'u8[65536]{0}', space=vmem, size = 0x10000, scoped, tag = 'input window, operand 1']
    #allocation6 [shape = 's32[2]{0}', space=sflag, size = 0x8, scoped, tag = 'scoped memory for tpu_custom_call.1']
    #allocation7 [shape = 'u8[32768]{0}', space=vmem, size = 0x8000, scoped, tag = 'input window, operand 2, single buffered']
    #allocation8 [shape = 'u8[32768]{0}', space=vmem, size = 0x8000, scoped, tag = 'input window, operand 4, single buffered']
    #allocation9 [shape = 's32[1]{0}', space=sflag, size = 0x4, scoped, tag = 'scoped memory for tpu_custom_call.1']
    #allocation10 [shape = 'u8[8192]{0}', space=vmem, size = 0x2000, scoped, tag = 'output window, operand 0']
    #allocation11 [shape = 'u8[8192]{0}', space=vmem, size = 0x2000, scoped, tag = 'output window, operand 1']
    #allocation12 [shape = 's32[2]{0}', space=sflag, size = 0x8, scoped, tag = 'scoped memory for tpu_custom_call.1']
    %15 = vsyncpa [#allocation3], 0
    %s16 = scalar_lea.sflag [#allocation3], 1
    %17 = vsyncpa %s16, 0
    %18 = vsyncpa [#allocation6], 0
    %s19 = scalar_lea.sflag [#allocation6], 1
    %20 = vsyncpa %s19, 0
    %21 = vsyncpa [#allocation9], 0
    %22 = vsyncpa [#allocation4], 0
    %s23 = scalar_lea.sflag [#allocation4], 1
    %24 = vsyncpa %s23, 0
    %25 = vsyncpa [#allocation12], 0
    %s26 = scalar_lea.sflag [#allocation12], 1
    %27 = vsyncpa %s26, 0
    loop: start=0, step=1, limit=10
    $region2: #{tpu_custom_call.1} parent=1 // loop_pre_header
      _
    $region3: #{tpu_custom_call.1} parent=1 // loop_header
      %s29 = sphi 0, %s33
      %p30 = scmp.ge.s32.totalorder %s29, 10
      %s36 = sphi 0, %s48
      %s37 = sphi 0, %s44
      %s38 = sphi 0, %s36
      %s39 = sphi 0, %s37
      %s40 = sphi 0, %s38
      %s41 = sphi 0, %s39
      %s51 = sphi 0, %s53
      %s54 = sphi 0, %s51
      %s55 = sphi 0, %s54
      %s71 = sphi 0, %s55
      %s79 = sphi 0, %s81
      %s82 = sphi 0, %s79
      %s83 = sphi 0, %s82
      %s99 = sphi 0, %s83
      %s103 = sphi 0, %s103
      %s105 = sphi 0, %s103
      %s106 = sphi 0, %s105
      %s120 = sphi 0, %s106
      %s124 = sphi 0, %s124
      %s126 = sphi 0, %s124
      %s127 = sphi 0, %s126
      %s141 = sphi 0, %s127
      %s145 = sphi 0, %s145
      %s147 = sphi 0, %s145
      %s148 = sphi 0, %s147
      %s162 = sphi 0, %s148
      %s166 = sphi 0, %s166
      %s168 = sphi 0, %s166
      %s169 = sphi 0, %s168
      %s183 = sphi 0, %s169
      %s187 = sphi 0, %s187
      %s189 = sphi 0, %s187
      %s190 = sphi 0, %s189
      %s204 = sphi 0, %s190
      %s208 = sphi 0, %s208
      %s210 = sphi 0, %s208
      %s211 = sphi 0, %s210
      %s225 = sphi 0, %s211
      %s231 = sphi 0, %s233
      %s234 = sphi 0, %s231
      %s235 = sphi 0, %s234
      %s251 = sphi 0, %s235
      %s257 = sphi 0, %s259
      %s260 = sphi 0, %s257
      %s261 = sphi 0, %s260
      %s277 = sphi 0, %s261
    $region4: #{tpu_custom_call.1} parent=1 // loop_header_branch
      %32 = sbr.rel (%p30) target = $region8
    $region5: #{tpu_custom_call.1} parent=1 // loop_body
      %s34 = ssub.s32 %s29, 1
      %s35 = ssub.s32 %s29, 2
      %s42 = sadd.s32 1, %s37
      %p43 = scmp.ge.s32.totalorder %s42, 4
      %s44 = scalar_select %p43, 0, %s42
      %s45 = sadd.s32 1, %s36
      %s46 = scalar_select %p43, %s45, %s36
      %p47 = scmp.ge.s32.totalorder %s46, 2
      %s48 = scalar_select %p47, 0, %s46
      %s49 = ssub.s32 %s36, %s48
      %p50 = scmp.eq.s32.totalorder %s49, 0
      %s52 = sadd.s32 %s51, 1
      %s53 = scalar_select %p50, %s51, %s52
      %p56 = pneg %p50
      %p57 = scmp.eq.s32.totalorder %s29, 7
      %p58 = por %p56, %p57
      %p59 = scmp.ne.s32.totalorder %s51, %s54
      %p60 = scmp.eq.s32.totalorder %s29, 0
      %p61 = por %p59, %p60
      %p62 = scmp.ne.s32.totalorder %s51, %s54
      %p63 = scmp.eq.s32.totalorder %s34, 7
      %p64 = por %p62, %p63
      %p65 = scmp.ne.s32.totalorder %s54, %s55
      %p66 = scmp.eq.s32.totalorder %s34, 0
      %p67 = por %p65, %p66
      %p68 = scmp.ne.s32.totalorder %s54, %s55
      %p69 = scmp.eq.s32.totalorder %s35, 7
      %p70 = por %p68, %p69
      %p72 = scmp.ne.s32.totalorder %s55, %s71
      %p73 = scmp.eq.s32.totalorder %s35, 0
      %p74 = por %p72, %p73
      %s75 = ssub.s32 %s36, %s48
      %s76 = ssub.s32 %s37, %s44
      %s77 = sor.u32 %s75, %s76
      %p78 = scmp.eq.s32.totalorder %s77, 0
      %s80 = sadd.s32 %s79, 1
      %s81 = scalar_select %p78, %s79, %s80
      %p84 = pneg %p78
      %p85 = scmp.eq.s32.totalorder %s29, 7
      %p86 = por %p84, %p85
      %p87 = scmp.ne.s32.totalorder %s79, %s82
      %p88 = scmp.eq.s32.totalorder %s29, 0
      %p89 = por %p87, %p88
      %p90 = scmp.ne.s32.totalorder %s79, %s82
      %p91 = scmp.eq.s32.totalorder %s34, 7
      %p92 = por %p90, %p91
      %p93 = scmp.ne.s32.totalorder %s82, %s83
      %p94 = scmp.eq.s32.totalorder %s34, 0
      %p95 = por %p93, %p94
      %p96 = scmp.ne.s32.totalorder %s82, %s83
      %p97 = scmp.eq.s32.totalorder %s35, 7
      %p98 = por %p96, %p97
      %p100 = scmp.ne.s32.totalorder %s83, %s99
      %p101 = scmp.eq.s32.totalorder %s35, 0
      %p102 = por %p100, %p101
      %s104 = sadd.s32 %s103, 1
      %p107 = scmp.eq.s32.totalorder %s29, 7
      %p108 = scmp.ne.s32.totalorder %s103, %s105
      %p109 = scmp.eq.s32.totalorder %s29, 0
      %p110 = por %p108, %p109
      %p111 = scmp.ne.s32.totalorder %s103, %s105
      %p112 = scmp.eq.s32.totalorder %s34, 7
      %p113 = por %p111, %p112
      %p114 = scmp.ne.s32.totalorder %s105, %s106
      %p115 = scmp.eq.s32.totalorder %s34, 0
      %p116 = por %p114, %p115
      %p117 = scmp.ne.s32.totalorder %s105, %s106
      %p118 = scmp.eq.s32.totalorder %s35, 7
      %p119 = por %p117, %p118
      %p121 = scmp.ne.s32.totalorder %s106, %s120
      %p122 = scmp.eq.s32.totalorder %s35, 0
      %p123 = por %p121, %p122
      %s125 = sadd.s32 %s124, 1
      %p128 = scmp.eq.s32.totalorder %s29, 7
      %p129 = scmp.ne.s32.totalorder %s124, %s126
      %p130 = scmp.eq.s32.totalorder %s29, 0
      %p131 = por %p129, %p130
      %p132 = scmp.ne.s32.totalorder %s124, %s126
      %p133 = scmp.eq.s32.totalorder %s34, 7
      %p134 = por %p132, %p133
      %p135 = scmp.ne.s32.totalorder %s126, %s127
      %p136 = scmp.eq.s32.totalorder %s34, 0
      %p137 = por %p135, %p136
      %p138 = scmp.ne.s32.totalorder %s126, %s127
      %p139 = scmp.eq.s32.totalorder %s35, 7
      %p140 = por %p138, %p139
      %p142 = scmp.ne.s32.totalorder %s127, %s141
      %p143 = scmp.eq.s32.totalorder %s35, 0
      %p144 = por %p142, %p143
      %s146 = sadd.s32 %s145, 1
      %p149 = scmp.eq.s32.totalorder %s29, 7
      %p150 = scmp.ne.s32.totalorder %s145, %s147
      %p151 = scmp.eq.s32.totalorder %s29, 0
      %p152 = por %p150, %p151
      %p153 = scmp.ne.s32.totalorder %s145, %s147
      %p154 = scmp.eq.s32.totalorder %s34, 7
      %p155 = por %p153, %p154
      %p156 = scmp.ne.s32.totalorder %s147, %s148
      %p157 = scmp.eq.s32.totalorder %s34, 0
      %p158 = por %p156, %p157
      %p159 = scmp.ne.s32.totalorder %s147, %s148
      %p160 = scmp.eq.s32.totalorder %s35, 7
      %p161 = por %p159, %p160
      %p163 = scmp.ne.s32.totalorder %s148, %s162
      %p164 = scmp.eq.s32.totalorder %s35, 0
      %p165 = por %p163, %p164
      %s167 = sadd.s32 %s166, 1
      %p170 = scmp.eq.s32.totalorder %s29, 7
      %p171 = scmp.ne.s32.totalorder %s166, %s168
      %p172 = scmp.eq.s32.totalorder %s29, 0
      %p173 = por %p171, %p172
      %p174 = scmp.ne.s32.totalorder %s166, %s168
      %p175 = scmp.eq.s32.totalorder %s34, 7
      %p176 = por %p174, %p175
      %p177 = scmp.ne.s32.totalorder %s168, %s169
      %p178 = scmp.eq.s32.totalorder %s34, 0
      %p179 = por %p177, %p178
      %p180 = scmp.ne.s32.totalorder %s168, %s169
      %p181 = scmp.eq.s32.totalorder %s35, 7
      %p182 = por %p180, %p181
      %p184 = scmp.ne.s32.totalorder %s169, %s183
      %p185 = scmp.eq.s32.totalorder %s35, 0
      %p186 = por %p184, %p185
      %s188 = sadd.s32 %s187, 1
      %p191 = scmp.eq.s32.totalorder %s29, 7
      %p192 = scmp.ne.s32.totalorder %s187, %s189
      %p193 = scmp.eq.s32.totalorder %s29, 0
      %p194 = por %p192, %p193
      %p195 = scmp.ne.s32.totalorder %s187, %s189
      %p196 = scmp.eq.s32.totalorder %s34, 7
      %p197 = por %p195, %p196
      %p198 = scmp.ne.s32.totalorder %s189, %s190
      %p199 = scmp.eq.s32.totalorder %s34, 0
      %p200 = por %p198, %p199
      %p201 = scmp.ne.s32.totalorder %s189, %s190
      %p202 = scmp.eq.s32.totalorder %s35, 7
      %p203 = por %p201, %p202
      %p205 = scmp.ne.s32.totalorder %s190, %s204
      %p206 = scmp.eq.s32.totalorder %s35, 0
      %p207 = por %p205, %p206
      %s209 = sadd.s32 %s208, 1
      %p212 = scmp.eq.s32.totalorder %s29, 7
      %p213 = scmp.ne.s32.totalorder %s208, %s210
      %p214 = scmp.eq.s32.totalorder %s29, 0
      %p215 = por %p213, %p214
      %p216 = scmp.ne.s32.totalorder %s208, %s210
      %p217 = scmp.eq.s32.totalorder %s34, 7
      %p218 = por %p216, %p217
      %p219 = scmp.ne.s32.totalorder %s210, %s211
      %p220 = scmp.eq.s32.totalorder %s34, 0
      %p221 = por %p219, %p220
      %p222 = scmp.ne.s32.totalorder %s210, %s211
      %p223 = scmp.eq.s32.totalorder %s35, 7
      %p224 = por %p222, %p223
      %p226 = scmp.ne.s32.totalorder %s211, %s225
      %p227 = scmp.eq.s32.totalorder %s35, 0
      %p228 = por %p226, %p227
      %s229 = ssub.s32 %s36, %s48
      %p230 = scmp.eq.s32.totalorder %s229, 0
      %s232 = sadd.s32 %s231, 1
      %s233 = scalar_select %p230, %s231, %s232
      %p236 = pneg %p230
      %p237 = scmp.eq.s32.totalorder %s29, 7
      %p238 = por %p236, %p237
      %p239 = scmp.ne.s32.totalorder %s231, %s234
      %p240 = scmp.eq.s32.totalorder %s29, 0
      %p241 = por %p239, %p240
      %p242 = scmp.ne.s32.totalorder %s231, %s234
      %p243 = scmp.eq.s32.totalorder %s34, 7
      %p244 = por %p242, %p243
      %p245 = scmp.ne.s32.totalorder %s234, %s235
      %p246 = scmp.eq.s32.totalorder %s34, 0
      %p247 = por %p245, %p246
      %p248 = scmp.ne.s32.totalorder %s234, %s235
      %p249 = scmp.eq.s32.totalorder %s35, 7
      %p250 = por %p248, %p249
      %p252 = scmp.ne.s32.totalorder %s235, %s251
      %p253 = scmp.eq.s32.totalorder %s35, 0
      %p254 = por %p252, %p253
      %s255 = ssub.s32 %s36, %s48
      %p256 = scmp.eq.s32.totalorder %s255, 0
      %s258 = sadd.s32 %s257, 1
      %s259 = scalar_select %p256, %s257, %s258
      %p262 = pneg %p256
      %p263 = scmp.eq.s32.totalorder %s29, 7
      %p264 = por %p262, %p263
      %p265 = scmp.ne.s32.totalorder %s257, %s260
      %p266 = scmp.eq.s32.totalorder %s29, 0
      %p267 = por %p265, %p266
      %p268 = scmp.ne.s32.totalorder %s257, %s260
      %p269 = scmp.eq.s32.totalorder %s34, 7
      %p270 = por %p268, %p269
      %p271 = scmp.ne.s32.totalorder %s260, %s261
      %p272 = scmp.eq.s32.totalorder %s34, 0
      %p273 = por %p271, %p272
      %p274 = scmp.ne.s32.totalorder %s260, %s261
      %p275 = scmp.eq.s32.totalorder %s35, 7
      %p276 = por %p274, %p275
      %p278 = scmp.ne.s32.totalorder %s261, %s277
      %p279 = scmp.eq.s32.totalorder %s35, 0
      %p280 = por %p278, %p279
      %p281 = scmp.le.s32.totalorder 1, %s29
      %p282 = scmp.lt.s32.totalorder %s29, 9
      %p283 = pnand %p281, %p282
      %p284 = pneg %p283
      // Predicated region
      $region9: #{tpu_custom_call.1} parent=5 // pred_check
        _
      $region10: #{tpu_custom_call.1} parent=5 // pred_check_branch
        %286 = sbr.rel (%p283) target = $region12
      $region11: #{tpu_custom_call.1} parent=5 // pred_region
        %s287 = ssub.s32 %s29, 1
        // Predicated region
        $region13: #{tpu_custom_call.1} parent=11 // pred_check
          %p288 = pneg %p116
        $region14: #{tpu_custom_call.1} parent=11 // pred_check_branch
          %290 = sbr.rel (%p288) target = $region16
        $region15: #{tpu_custom_call.1} parent=11 // pred_region
          %292 = vsyncadd [#allocation6], 0
          %s293 = sshll.u32 %s2, 4
          %s294 = int_to_ptr.hbm [resolvable:$true] %s293
          %s295 = sshll.u32 [#allocation7], 4
          %s296 = int_to_ptr.vmem [resolvable:$true] %s295
          %301 = dma.hbm_to_vmem [thread:$0]  %s294, 1024, %s296, [#allocation6], 64, 64, 4
        $region16: #{tpu_custom_call.1} parent=11 // pred_fallthru
          _
        // Predicated region
        $region17: #{tpu_custom_call.1} parent=11 // pred_check
          %p302 = pneg %p137
        $region18: #{tpu_custom_call.1} parent=11 // pred_check_branch
          %304 = sbr.rel (%p302) target = $region20
        $region19: #{tpu_custom_call.1} parent=11 // pred_region
          _
        $region20: #{tpu_custom_call.1} parent=11 // pred_fallthru
          _
        // Predicated region
        $region21: #{tpu_custom_call.1} parent=11 // pred_check
          %p305 = pneg %p158
        $region22: #{tpu_custom_call.1} parent=11 // pred_check_branch
          %307 = sbr.rel (%p305) target = $region24
        $region23: #{tpu_custom_call.1} parent=11 // pred_region
          %309 = vsyncadd [#allocation9], 0
          %s310 = sshll.u32 %s4, 4
          %s311 = int_to_ptr.hbm [resolvable:$true] %s310
          %s312 = sshll.u32 [#allocation8], 4
          %s313 = int_to_ptr.vmem [resolvable:$true] %s312
          %318 = dma.hbm_to_vmem [thread:$0]  %s311, 1024, %s313, [#allocation9], 64, 64, 4
        $region24: #{tpu_custom_call.1} parent=11 // pred_fallthru
          _
        // Predicated region
        $region25: #{tpu_custom_call.1} parent=11 // pred_check
          %p319 = pneg %p179
        $region26: #{tpu_custom_call.1} parent=11 // pred_check_branch
          %321 = sbr.rel (%p319) target = $region28
        $region27: #{tpu_custom_call.1} parent=11 // pred_region
          _
        $region28: #{tpu_custom_call.1} parent=11 // pred_fallthru
          _
        // Predicated region
        $region29: #{tpu_custom_call.1} parent=11 // pred_check
          %p322 = pneg %p200
        $region30: #{tpu_custom_call.1} parent=11 // pred_check_branch
          %324 = sbr.rel (%p322) target = $region32
        $region31: #{tpu_custom_call.1} parent=11 // pred_region
          _
        $region32: #{tpu_custom_call.1} parent=11 // pred_fallthru
          _
        // Predicated region
        $region33: #{tpu_custom_call.1} parent=11 // pred_check
          %p325 = pneg %p221
        $region34: #{tpu_custom_call.1} parent=11 // pred_check_branch
          %327 = sbr.rel (%p325) target = $region36
        $region35: #{tpu_custom_call.1} parent=11 // pred_region
          _
        $region36: #{tpu_custom_call.1} parent=11 // pred_fallthru
          _
      $region12: #{tpu_custom_call.1} parent=5 // pred_fallthru
        _
      %p328 = scmp.lt.s32.totalorder %s29, 8
      // Predicated region
      $region37: #{tpu_custom_call.1} parent=5 // pred_check
        %p329 = pneg %p328
      $region38: #{tpu_custom_call.1} parent=5 // pred_check_branch
        %331 = sbr.rel (%p329) target = $region40
      $region39: #{tpu_custom_call.1} parent=5 // pred_region
        // Predicated region
        $region41: #{tpu_custom_call.1} parent=39 // pred_check
          %p332 = pneg %p61
        $region42: #{tpu_custom_call.1} parent=39 // pred_check_branch
          %334 = sbr.rel (%p332) target = $region44
        $region43: #{tpu_custom_call.1} parent=39 // pred_region
          %s335 = sand.u32 %s51, 1
          %s336 = scalar_lea.sflag [#allocation3], %s335
          %s337 = sand.u32 %s51, 1
          %s338 = smul.addr %s337, 8
          %s339 = scalar_lea.vmem [#allocation2], %s338
          %341 = vsyncadd %s336, 0
          %s342 = smul.addr %s36, 8
          %s343 = scalar_lea.hbm %s0, %s342
          %s345 = sshll.u32 %s343, 4
          %s346 = int_to_ptr.hbm [resolvable:$true] %s345
          %s347 = sshll.u32 %s339, 4
          %s348 = int_to_ptr.vmem [resolvable:$true] %s347
          %350 = dma.hbm_to_vmem [thread:$0]  %s346, 128, %s348, %s336
        $region44: #{tpu_custom_call.1} parent=39 // pred_fallthru
          _
        // Predicated region
        $region45: #{tpu_custom_call.1} parent=39 // pred_check
          %p351 = pneg %p89
        $region46: #{tpu_custom_call.1} parent=39 // pred_check_branch
          %353 = sbr.rel (%p351) target = $region48
        $region47: #{tpu_custom_call.1} parent=39 // pred_region
          #allocation14 [shape = 'u32[6]{0}', space=smem, size = 0x18, scoped, tag = 'DMA stride descriptor']
          %s354 = sand.u32 %s29, 1
          %s355 = scalar_lea.sflag [#allocation6], %s354
          %s356 = sand.u32 %s79, 1
          %s357 = smul.addr %s356, 64
          %s358 = scalar_lea.vmem [#allocation5], %s357
          %s359 = smul.u32 8, %s36
          %s360 = smul.u32 2, %s37
          %362 = vsyncadd %s355, 0
          %s363 = smul.addr %s359, 8
          %s364 = sadd.s32 %s360, %s363
          %s365 = smul.addr %s364, 4
          %s366 = scalar_lea.hbm %s1, %s365
          %s368 = sshll.u32 1, 14
          %s369 = sxor.u32 4294967295, %s368
          %s371 = sld [smem:[#allocation0]]
          %s372 = sadd.s32 2, %s371
          %s374 = sshll.u32 7, 26
          %s375 = sxor.u32 4294967295, %s374
          %s376 = sand.u32 0, %s375
          %s377 = sshll.u32 %s372, 26
          %s378 = sor.u32 %s376, %s377
          %s379 = sshll.u32 %s366, 4
          %s380 = int_to_ptr.hbm [resolvable:$true] %s379
          %s381 = sshll.u32 %s358, 4
          %s382 = int_to_ptr.vmem [resolvable:$true] %s381
          %388 = sst [smem:[#allocation14]] 512
          %s389 = scalar_lea.smem [#allocation14], 1
          %390 = sst [smem:[%s389]] 128
          %s391 = scalar_lea.smem [#allocation14], 2
          %392 = sst [smem:[%s391]] 2
          %s393 = scalar_lea.smem [#allocation14], 3
          %394 = sst [smem:[%s393]] 64
          %s395 = scalar_lea.smem [#allocation14], 4
          %396 = sst [smem:[%s395]] 64
          %s397 = scalar_lea.smem [#allocation14], 5
          %398 = sst [smem:[%s397]] 4
          %400 = dma.general %s380, 1024, %s382, %s355, [#allocation13], [#allocation14], %s378, 0
        $region48: #{tpu_custom_call.1} parent=39 // pred_fallthru
          _
      $region40: #{tpu_custom_call.1} parent=5 // pred_fallthru
        _
      %p401 = scmp.le.s32.totalorder 1, %s29
      %p402 = scmp.lt.s32.totalorder %s29, 9
      %p403 = pnand %p401, %p402
      %p404 = pneg %p403
      // Predicated region
      $region49: #{tpu_custom_call.1} parent=5 // pred_check
        _
      $region50: #{tpu_custom_call.1} parent=5 // pred_check_branch
        %406 = sbr.rel (%p403) target = $region52
      $region51: #{tpu_custom_call.1} parent=5 // pred_region
        %s407 = ssub.s32 %s29, 1
        %s408 = sand.u32 %s54, 1
        %s409 = scalar_lea.sflag [#allocation3], %s408
        %s410 = sand.u32 %s54, 1
        %s411 = smul.addr %s410, 8
        %s412 = scalar_lea.vmem [#allocation2], %s411
        // Predicated region
        $region53: #{tpu_custom_call.1} parent=51 // pred_check
          %p413 = pneg %p67
        $region54: #{tpu_custom_call.1} parent=51 // pred_check_branch
          %415 = sbr.rel (%p413) target = $region56
        $region55: #{tpu_custom_call.1} parent=51 // pred_region
          %417 = dma.done %s409, 128
        $region56: #{tpu_custom_call.1} parent=51 // pred_fallthru
          _
        %s418 = sand.u32 %s34, 1
        %s419 = scalar_lea.sflag [#allocation6], %s418
        %s420 = sand.u32 %s82, 1
        %s421 = smul.addr %s420, 64
        %s422 = scalar_lea.vmem [#allocation5], %s421
        // Predicated region
        $region57: #{tpu_custom_call.1} parent=51 // pred_check
          %p423 = pneg %p95
        $region58: #{tpu_custom_call.1} parent=51 // pred_check_branch
          %425 = sbr.rel (%p423) target = $region60
        $region59: #{tpu_custom_call.1} parent=51 // pred_region
          %427 = dma.done %s419, 1024
        $region60: #{tpu_custom_call.1} parent=51 // pred_fallthru
          _
        // Predicated region
        $region61: #{tpu_custom_call.1} parent=51 // pred_check
          %p428 = pneg %p116
        $region62: #{tpu_custom_call.1} parent=51 // pred_check_branch
          %430 = sbr.rel (%p428) target = $region64
        $region63: #{tpu_custom_call.1} parent=51 // pred_region
          %432 = dma.done [#allocation6], 1024
        $region64: #{tpu_custom_call.1} parent=51 // pred_fallthru
          _
        // Predicated region
        $region65: #{tpu_custom_call.1} parent=51 // pred_check
          %p433 = pneg %p158
        $region66: #{tpu_custom_call.1} parent=51 // pred_check_branch
          %435 = sbr.rel (%p433) target = $region68
        $region67: #{tpu_custom_call.1} parent=51 // pred_region
          %437 = dma.done [#allocation9], 1024
        $region68: #{tpu_custom_call.1} parent=51 // pred_fallthru
          _
        %s438 = sand.u32 %s54, 1
        %s439 = scalar_lea.sflag [#allocation3], %s438
        %s440 = sand.u32 %s54, 1
        %s441 = smul.addr %s440, 8
        %s442 = scalar_lea.vmem [#allocation2], %s441
        %p443 = pneg %p67
        %p444 = pneg %p64
        %s445 = sand.u32 %s34, 1
        %s446 = scalar_lea.sflag [#allocation6], %s445
        %s447 = sand.u32 %s82, 1
        %s448 = smul.addr %s447, 64
        %s449 = scalar_lea.vmem [#allocation5], %s448
        %p450 = pneg %p95
        %p451 = pneg %p92
        %p452 = pneg %p116
        %p453 = pneg %p113
        %p454 = pneg %p137
        %p455 = pneg %p134
        %p456 = pneg %p158
        %p457 = pneg %p155
        %p458 = pneg %p179
        %p459 = pneg %p176
        %p460 = pneg %p200
        %p461 = pneg %p197
        %p462 = pneg %p221
        %p463 = pneg %p218
        %p464 = pneg %p247
        %p465 = pneg %p244
        %s466 = sand.u32 %s234, 1
        %s467 = scalar_lea.sflag [#allocation4], %s466
        %s468 = sand.u32 %s234, 1
        %s469 = smul.addr %s468, 8
        %s470 = scalar_lea.vmem [#allocation10], %s469
        %p471 = pneg %p273
        %p472 = pneg %p270
        %s473 = sand.u32 %s260, 1
        %s474 = scalar_lea.sflag [#allocation12], %s473
        %s475 = sand.u32 %s260, 1
        %s476 = smul.addr %s475, 8
        %s477 = scalar_lea.vmem [#allocation11], %s476
        %s478 = smul.u32 8, %s38
        %s479 = smul.u32 2, %s39
        %p480 = scmp.eq.s32.totalorder %s39, 0
        // Predicated region
        $region69: #{tpu_custom_call.1} parent=51 // pred_check
          %p481 = pneg %p480
        $region70: #{tpu_custom_call.1} parent=51 // pred_check_branch
          %483 = sbr.rel (%p481) target = $region72
        $region71: #{tpu_custom_call.1} parent=51 // pred_region
          %484 = vst [vmem:[%s470] sm:$0xff] 0.0
          %v485 = vld [vmem:[%s412] sm:$0xff]
          %v486 = vld [vmem:[#allocation7] sm:$0xf]
          %v487 = vld [vmem:[#allocation7 + $0x4] sm:$0xf]
          %v488 = vld [vmem:[#allocation7 + $0x8] sm:$0xf]
          %v489 = vld [vmem:[#allocation7 + $0xc] sm:$0xf]
          %v490 = vld [vmem:[#allocation7 + $0x10] sm:$0xf]
          %v491 = vld [vmem:[#allocation7 + $0x14] sm:$0xf]
          %v492 = vld [vmem:[#allocation7 + $0x18] sm:$0xf]
          %v493 = vld [vmem:[#allocation7 + $0x1c] sm:$0xf]
          %v494 = vld [vmem:[#allocation7 + $0x20] sm:$0xf]
          %v495 = vld [vmem:[#allocation7 + $0x24] sm:$0xf]
          %v496 = vld [vmem:[#allocation7 + $0x28] sm:$0xf]
          %v497 = vld [vmem:[#allocation7 + $0x2c] sm:$0xf]
          %v498 = vld [vmem:[#allocation7 + $0x30] sm:$0xf]
          %v499 = vld [vmem:[#allocation7 + $0x34] sm:$0xf]
          %v500 = vld [vmem:[#allocation7 + $0x38] sm:$0xf]
          %v501 = vld [vmem:[#allocation7 + $0x3c] sm:$0xf]
          %v502 = vld [vmem:[%s3] sm:$0x1]
          %v503 = vld [vmem:[#allocation8] sm:$0xf]
          %v504 = vld [vmem:[#allocation8 + $0x4] sm:$0xf]
          %v505 = vld [vmem:[#allocation8 + $0x8] sm:$0xf]
          %v506 = vld [vmem:[#allocation8 + $0xc] sm:$0xf]
          %v507 = vld [vmem:[#allocation8 + $0x10] sm:$0xf]
          %v508 = vld [vmem:[#allocation8 + $0x14] sm:$0xf]
          %v509 = vld [vmem:[#allocation8 + $0x18] sm:$0xf]
          %v510 = vld [vmem:[#allocation8 + $0x1c] sm:$0xf]
          %v511 = vld [vmem:[#allocation8 + $0x20] sm:$0xf]
          %v512 = vld [vmem:[#allocation8 + $0x24] sm:$0xf]
          %v513 = vld [vmem:[#allocation8 + $0x28] sm:$0xf]
          %v514 = vld [vmem:[#allocation8 + $0x2c] sm:$0xf]
          %v515 = vld [vmem:[#allocation8 + $0x30] sm:$0xf]
          %v516 = vld [vmem:[#allocation8 + $0x34] sm:$0xf]
          %v517 = vld [vmem:[#allocation8 + $0x38] sm:$0xf]
          %v518 = vld [vmem:[#allocation8 + $0x3c] sm:$0xf]
          %v519 = vld [vmem:[%s5] sm:$0x1]
          %v520 = vld [vmem:[%s6] sm:$0x1]
          %v521 = vld [vmem:[%s7] sm:$0x1]
          %v522 = vpack.c.bf16 %v485, %v485
          %v524 = vperm.slane %v502, 0
          %v542 = vunpack.c.l.b16 %v486
          %v543 = vunpack.c.l.b16 %v487
          %v544 = vunpack.c.l.b16 %v488
          %v545 = vunpack.c.l.b16 %v489
          %v546 = vunpack.c.l.b16 %v490
          %v547 = vunpack.c.l.b16 %v491
          %v548 = vunpack.c.l.b16 %v492
          %v549 = vunpack.c.l.b16 %v493
          %v550 = vunpack.c.l.b16 %v494
          %v551 = vunpack.c.l.b16 %v495
          %v552 = vunpack.c.l.b16 %v496
          %v553 = vunpack.c.l.b16 %v497
          %v554 = vunpack.c.l.b16 %v498
          %v555 = vunpack.c.l.b16 %v499
          %v556 = vunpack.c.l.b16 %v500
          %v557 = vunpack.c.l.b16 %v501
          %v558 = vpack.c.b16 %v543, %v542
          %v559 = vpack.c.b16 %v545, %v544
          %v560 = vpack.c.b16 %v547, %v546
          %v561 = vpack.c.b16 %v549, %v548
          %v562 = vpack.c.b16 %v551, %v550
          %v563 = vpack.c.b16 %v553, %v552
          %v564 = vpack.c.b16 %v555, %v554
          %v565 = vpack.c.b16 %v557, %v556
          %574 = vmatpush.bf16.msra.mxu0 %v565
          %575 = vmatpush.bf16.msra.mxu0 %v564
          %576 = vmatpush.bf16.msra.mxu0 %v563
          %577 = vmatpush.bf16.msra.mxu0 %v562
          %578 = vmatpush.bf16.msra.mxu0 %v561
          %579 = vmatpush.bf16.msra.mxu0 %v560
          %580 = vmatpush.bf16.msra.mxu0 %v559
          %581 = vmatpush.bf16.msra.mxu0 %v558
          %582 = vmatmul.bf16.gmra.mxu0 %v522
          %v583 = vpop.f32.mrf.mxu0
          %v584 = vadd.f32 %v524, %v583
          %v585 = vpop.f32.mrf.mxu0
          %586 = vdwg.mxu0
          %v587 = vmul.f32 %v584, 0.5
          %v588 = vmul.f32 %v584, 0.70710677
          %v589 = vand.u32 2147483647, %v588
          %v590 = vmul.f32 %v589, 0.3275911
          %v591 = vadd.f32 %v590, 1.0
          %v592 = vrcp.pop %v591
          %v593 = vmul.f32 %v591, %v592
          %v594 = vsub.f32 1.0, %v593
          %v595 = vmul.f32 %v592, %v594
          %v596 = vadd.f32 %v592, %v595
          %vm597 = vweird.f32 %v591
          %vm598 = vweird.f32 %v592
          %vm599 = vmor %vm597, %vm598
          %v600 = vsel %vm599, %v592, %v596
          %v601 = vand.u32 2147483647, %v591
          %vm602 = vcmp.eq.f32.partialorder %v601, 8.507059e+37
          %v603 = vand.u32 %v591, 2147483648
          %v604 = vor.u32 1.1754944e-38, %v603
          %v605 = vsel %vm602, %v604, %v600
          %v606 = vmul.f32 1.0, %v605
          %v607 = vmul.f32 %v606, 1.0614054
          %v608 = vadd.f32 %v607, -1.4531521
          %v609 = vmul.f32 %v608, %v606
          %v610 = vadd.f32 %v609, 1.4214138
          %v611 = vmul.f32 %v610, %v606
          %v612 = vadd.f32 %v611, -0.28449672
          %v613 = vmul.f32 %v612, %v606
          %v614 = vadd.f32 %v613, 0.2548296
          %v615 = vmul.f32 %v614, %v606
          %v616 = vsub.f32 0.0, %v589
          %v617 = vmul.f32 %v616, %v589
          %v618 = vmul.f32 %v617, 1.442695
          %v619 = vpow.pop %v618
          %v620 = vmul.f32 %v615, %v619
          %v621 = vsub.f32 1.0, %v620
          %vm622 = vcmp.ge.f32.partialorder %v588, 0.0
          %v623 = vsub.f32 0.0, %v621
          %v624 = vsel %vm622, %v621, %v623
          %v625 = vadd.f32 %v624, 1.0
          %v626 = vmul.f32 %v587, %v625
          %v627 = vpack.c.bf16 %v626, %v626
          %v629 = vperm.slane %v519, 0
          %v647 = vunpack.c.l.b16 %v503
          %v648 = vunpack.c.l.b16 %v504
          %v649 = vunpack.c.l.b16 %v505
          %v650 = vunpack.c.l.b16 %v506
          %v651 = vunpack.c.l.b16 %v507
          %v652 = vunpack.c.l.b16 %v508
          %v653 = vunpack.c.l.b16 %v509
          %v654 = vunpack.c.l.b16 %v510
          %v655 = vunpack.c.l.b16 %v511
          %v656 = vunpack.c.l.b16 %v512
          %v657 = vunpack.c.l.b16 %v513
          %v658 = vunpack.c.l.b16 %v514
          %v659 = vunpack.c.l.b16 %v515
          %v660 = vunpack.c.l.b16 %v516
          %v661 = vunpack.c.l.b16 %v517
          %v662 = vunpack.c.l.b16 %v518
          %v663 = vpack.c.b16 %v648, %v647
          %v664 = vpack.c.b16 %v650, %v649
          %v665 = vpack.c.b16 %v652, %v651
          %v666 = vpack.c.b16 %v654, %v653
          %v667 = vpack.c.b16 %v656, %v655
          %v668 = vpack.c.b16 %v658, %v657
          %v669 = vpack.c.b16 %v660, %v659
          %v670 = vpack.c.b16 %v662, %v661
          %679 = vmatpush.bf16.msra.mxu0 %v670
          %680 = vmatpush.bf16.msra.mxu0 %v669
          %681 = vmatpush.bf16.msra.mxu0 %v668
          %682 = vmatpush.bf16.msra.mxu0 %v667
          %683 = vmatpush.bf16.msra.mxu0 %v666
          %684 = vmatpush.bf16.msra.mxu0 %v665
          %685 = vmatpush.bf16.msra.mxu0 %v664
          %686 = vmatpush.bf16.msra.mxu0 %v663
          %687 = vmatmul.bf16.gmra.mxu0 %v627
          %v688 = vpop.f32.mrf.mxu0
          %v689 = vadd.f32 %v629, %v688
          %v690 = vpop.f32.mrf.mxu0
          %691 = vdwg.mxu0
          %v692 = vadd.f32 %v689, %v584
          %693 = vadd.xlane.f32.xlu0 %v692
          %v694 = vpop.xlane.xlu0 %693
          %v695 = vrcp.pop 128.0
          %v696 = vmul.f32 128.0, %v695
          %v697 = vsub.f32 1.0, %v696
          %v698 = vmul.f32 %v695, %v697
          %v699 = vadd.f32 %v695, %v698
          %vm700 = vweird.f32 %v695
          %v701 = vsel %vm700, %v695, %v699
          %v702 = vmul.f32 %v694, %v701
          %v703 = vsub.f32 %v692, %v702
          %v704 = vmul.f32 %v703, %v703
          %705 = vadd.xlane.f32.xlu0 %v704
          %v706 = vpop.xlane.xlu0 %705
          %v707 = vmul.f32 %v706, %v701
          %v708 = vadd.f32 %v707, 1e-05
          %v709 = vrsqrt.pop %v708
          %v710 = vmul.f32 %v709, %v708
          %v711 = vmul.f32 %v710, %v709
          %v712 = vmul.f32 0.5, %v711
          %v713 = vsub.f32 1.5, %v712
          %v714 = vmul.f32 %v709, %v713
          %vm715 = vweird.f32 %v708
          %vm716 = vweird.f32 %v709
          %vm717 = vmor %vm715, %vm716
          %v718 = vsel %vm717, %v709, %v714
          %v719 = vmul.f32 %v703, %v718
          %v721 = vperm.slane %v520, 0
          %v723 = vmul.f32 %v719, %v721
          %v725 = vperm.slane %v521, 0
          %v727 = vadd.f32 %v723, %v725
          %728 = vst [vmem:[%s477] sm:$0xff] %v727
        $region72: #{tpu_custom_call.1} parent=51 // pred_fallthru
          _
        %v729 = vld [vmem:[%s470] sm:$0xff]
        %v730 = vld [vmem:[%s422] sm:$0xf]
        %v731 = vld [vmem:[%s422 + $0x4] sm:$0xf]
        %v732 = vld [vmem:[%s422 + $0x8] sm:$0xf]
        %v733 = vld [vmem:[%s422 + $0xc] sm:$0xf]
        %v734 = vld [vmem:[%s422 + $0x10] sm:$0xf]
        %v735 = vld [vmem:[%s422 + $0x14] sm:$0xf]
        %v736 = vld [vmem:[%s422 + $0x18] sm:$0xf]
        %v737 = vld [vmem:[%s422 + $0x1c] sm:$0xf]
        %v738 = vld [vmem:[%s422 + $0x20] sm:$0xf]
        %v739 = vld [vmem:[%s422 + $0x24] sm:$0xf]
        %v740 = vld [vmem:[%s422 + $0x28] sm:$0xf]
        %v741 = vld [vmem:[%s422 + $0x2c] sm:$0xf]
        %v742 = vld [vmem:[%s422 + $0x30] sm:$0xf]
        %v743 = vld [vmem:[%s422 + $0x34] sm:$0xf]
        %v744 = vld [vmem:[%s422 + $0x38] sm:$0xf]
        %v745 = vld [vmem:[%s422 + $0x3c] sm:$0xf]
        %v746 = vunpack.c.l.bf16 %v730
        %v747 = vunpack.c.l.bf16 %v731
        %v748 = vunpack.c.l.bf16 %v732
        %v749 = vunpack.c.l.bf16 %v733
        %v750 = vunpack.c.l.bf16 %v734
        %v751 = vunpack.c.l.bf16 %v735
        %v752 = vunpack.c.l.bf16 %v736
        %v753 = vunpack.c.l.bf16 %v737
        %v754 = vunpack.c.l.bf16 %v738
        %v755 = vunpack.c.l.bf16 %v739
        %v756 = vunpack.c.l.bf16 %v740
        %v757 = vunpack.c.l.bf16 %v741
        %v758 = vunpack.c.l.bf16 %v742
        %v759 = vunpack.c.l.bf16 %v743
        %v760 = vunpack.c.l.bf16 %v744
        %v761 = vunpack.c.l.bf16 %v745
        %v762 = vadd.f32 %v746, %v747
        %v763 = vrot.slane %v762, 4
        %v764 = vadd.f32 %v762, %v763
        %v765 = vrot.slane %v764, 2
        %v766 = vadd.f32 %v764, %v765
        %v767 = vrot.slane %v766, 1
        %v768 = vadd.f32 %v766, %v767
        %v769 = vadd.f32 %v748, %v749
        %v770 = vrot.slane %v769, 4
        %v771 = vadd.f32 %v769, %v770
        %v772 = vrot.slane %v771, 2
        %v773 = vadd.f32 %v771, %v772
        %v774 = vrot.slane %v773, 1
        %v775 = vadd.f32 %v773, %v774
        %v776 = vadd.f32 %v750, %v751
        %v777 = vrot.slane %v776, 4
        %v778 = vadd.f32 %v776, %v777
        %v779 = vrot.slane %v778, 2
        %v780 = vadd.f32 %v778, %v779
        %v781 = vrot.slane %v780, 1
        %v782 = vadd.f32 %v780, %v781
        %v783 = vadd.f32 %v752, %v753
        %v784 = vrot.slane %v783, 4
        %v785 = vadd.f32 %v783, %v784
        %v786 = vrot.slane %v785, 2
        %v787 = vadd.f32 %v785, %v786
        %v788 = vrot.slane %v787, 1
        %v789 = vadd.f32 %v787, %v788
        %v790 = vadd.f32 %v754, %v755
        %v791 = vrot.slane %v790, 4
        %v792 = vadd.f32 %v790, %v791
        %v793 = vrot.slane %v792, 2
        %v794 = vadd.f32 %v792, %v793
        %v795 = vrot.slane %v794, 1
        %v796 = vadd.f32 %v794, %v795
        %v797 = vadd.f32 %v756, %v757
        %v798 = vrot.slane %v797, 4
        %v799 = vadd.f32 %v797, %v798
        %v800 = vrot.slane %v799, 2
        %v801 = vadd.f32 %v799, %v800
        %v802 = vrot.slane %v801, 1
        %v803 = vadd.f32 %v801, %v802
        %v804 = vadd.f32 %v758, %v759
        %v805 = vrot.slane %v804, 4
        %v806 = vadd.f32 %v804, %v805
        %v807 = vrot.slane %v806, 2
        %v808 = vadd.f32 %v806, %v807
        %v809 = vrot.slane %v808, 1
        %v810 = vadd.f32 %v808, %v809
        %v811 = vadd.f32 %v760, %v761
        %v812 = vrot.slane %v811, 4
        %v813 = vadd.f32 %v811, %v812
        %v814 = vrot.slane %v813, 2
        %v815 = vadd.f32 %v813, %v814
        %v816 = vrot.slane %v815, 1
        %v817 = vadd.f32 %v815, %v816
        %vm826 = vcmask 1041409
        %v827 = vsel %vm826, %v775, %v768
        %vm828 = vcmask 1042434
        %v829 = vsel %vm828, %v782, %v827
        %vm830 = vcmask 1043459
        %v831 = vsel %vm830, %v789, %v829
        %vm832 = vcmask 1044484
        %v833 = vsel %vm832, %v796, %v831
        %vm834 = vcmask 1045509
        %v835 = vsel %vm834, %v803, %v833
        %vm836 = vcmask 1046534
        %v837 = vsel %vm836, %v810, %v835
        %vm838 = vcmask 1047559
        %v839 = vsel %vm838, %v817, %v837
        %v841 = vadd.f32 %v729, %v839
        %842 = vst [vmem:[%s470] sm:$0xff] %v841
        %p843 = scmp.eq.s32.totalorder %s39, 3
        // Predicated region
        $region73: #{tpu_custom_call.1} parent=51 // pred_check
          %p844 = pneg %p843
        $region74: #{tpu_custom_call.1} parent=51 // pred_check_branch
          %846 = sbr.rel (%p844) target = $region76
        $region75: #{tpu_custom_call.1} parent=51 // pred_region
          %v847 = vld [vmem:[%s470] sm:$0xff]
          %v848 = vmul.f32 %v847, 0.015625
          %849 = vst [vmem:[%s470] sm:$0xff] %v848
        $region76: #{tpu_custom_call.1} parent=51 // pred_fallthru
          _
        %s850 = sand.u32 %s234, 1
        %s851 = scalar_lea.sflag [#allocation4], %s850
        %s852 = sand.u32 %s234, 1
        %s853 = smul.addr %s852, 8
        %s854 = scalar_lea.vmem [#allocation10], %s853
        %s855 = sand.u32 %s260, 1
        %s856 = scalar_lea.sflag [#allocation12], %s855
        %s857 = sand.u32 %s260, 1
        %s858 = smul.addr %s857, 8
        %s859 = scalar_lea.vmem [#allocation11], %s858
        // Predicated region
        $region77: #{tpu_custom_call.1} parent=51 // pred_check
          %p860 = pneg %p244
        $region78: #{tpu_custom_call.1} parent=51 // pred_check_branch
          %862 = sbr.rel (%p860) target = $region80
        $region79: #{tpu_custom_call.1} parent=51 // pred_region
          %864 = vsyncadd %s851, 0
          %s865 = smul.addr %s38, 8
          %s866 = scalar_lea.hbm %s8, %s865
          %s868 = sshll.u32 %s854, 4
          %s869 = int_to_ptr.vmem [resolvable:$true] %s868
          %s870 = sshll.u32 %s866, 4
          %s871 = int_to_ptr.hbm [resolvable:$true] %s870
          %873 = dma.vmem_to_hbm [thread:$0]  %s869, 128, %s871, %s851
        $region80: #{tpu_custom_call.1} parent=51 // pred_fallthru
          _
        // Predicated region
        $region81: #{tpu_custom_call.1} parent=51 // pred_check
          %p874 = pneg %p270
        $region82: #{tpu_custom_call.1} parent=51 // pred_check_branch
          %876 = sbr.rel (%p874) target = $region84
        $region83: #{tpu_custom_call.1} parent=51 // pred_region
          %878 = vsyncadd %s856, 0
          %s879 = smul.addr %s38, 8
          %s880 = scalar_lea.hbm %s9, %s879
          %s882 = sshll.u32 %s859, 4
          %s883 = int_to_ptr.vmem [resolvable:$true] %s882
          %s884 = sshll.u32 %s880, 4
          %s885 = int_to_ptr.hbm [resolvable:$true] %s884
          %887 = dma.vmem_to_hbm [thread:$0]  %s883, 128, %s885, %s856
        $region84: #{tpu_custom_call.1} parent=51 // pred_fallthru
          _
      $region52: #{tpu_custom_call.1} parent=5 // pred_fallthru
        _
      %p888 = scmp.le.s32.totalorder 2, %s29
      // Predicated region
      $region85: #{tpu_custom_call.1} parent=5 // pred_check
        %p889 = pneg %p888
      $region86: #{tpu_custom_call.1} parent=5 // pred_check_branch
        %891 = sbr.rel (%p889) target = $region88
      $region87: #{tpu_custom_call.1} parent=5 // pred_region
        %s892 = ssub.s32 %s29, 2
        // Predicated region
        $region89: #{tpu_custom_call.1} parent=87 // pred_check
          %p893 = pneg %p250
        $region90: #{tpu_custom_call.1} parent=87 // pred_check_branch
          %895 = sbr.rel (%p893) target = $region92
        $region91: #{tpu_custom_call.1} parent=87 // pred_region
          %s896 = sand.u32 %s235, 1
          %s897 = scalar_lea.sflag [#allocation4], %s896
          %s898 = sand.u32 %s235, 1
          %s899 = smul.addr %s898, 8
          %s900 = scalar_lea.vmem [#allocation10], %s899
          %902 = dma.done %s897, 128
        $region92: #{tpu_custom_call.1} parent=87 // pred_fallthru
          _
        // Predicated region
        $region93: #{tpu_custom_call.1} parent=87 // pred_check
          %p903 = pneg %p276
        $region94: #{tpu_custom_call.1} parent=87 // pred_check_branch
          %905 = sbr.rel (%p903) target = $region96
        $region95: #{tpu_custom_call.1} parent=87 // pred_region
          %s906 = sand.u32 %s261, 1
          %s907 = scalar_lea.sflag [#allocation12], %s906
          %s908 = sand.u32 %s261, 1
          %s909 = smul.addr %s908, 8
          %s910 = scalar_lea.vmem [#allocation11], %s909
          %912 = dma.done %s907, 128
        $region96: #{tpu_custom_call.1} parent=87 // pred_fallthru
          _
      $region88: #{tpu_custom_call.1} parent=5 // pred_fallthru
        _
    $region6: #{tpu_custom_call.1} parent=1 // loop_footer
      %s33 = sadd.s32 1, %s29
    $region7: #{tpu_custom_call.1} parent=1 // loop_footer_branch
      %28 = sbr.rel target = $region3
    $region8: #{tpu_custom_call.1} parent=1 // loop_exit
      _
    %913 = vsyncpa [#allocation3], 1
    %s914 = scalar_lea.sflag [#allocation3], 1
    %915 = vsyncpa %s914, 1
    %916 = vsyncpa [#allocation6], 1
    %s917 = scalar_lea.sflag [#allocation6], 1
    %918 = vsyncpa %s917, 1
    %919 = vsyncpa [#allocation9], 1
    %920 = vsyncpa [#allocation4], 1
    %s921 = scalar_lea.sflag [#allocation4], 1
    %922 = vsyncpa %s921, 1
    %923 = vsyncpa [#allocation12], 1
    %s924 = scalar_lea.sflag [#allocation12], 1
    %925 = vsyncpa %s924, 1

// kernel: tpu_custom_call.1
$region0: #{tpu_custom_call.1}
  #allocation0 [shape = 'u32[]', space=smem, size = 0x4, offset = 0x4, fixed_abs, tag = 'smem constant byte address 0x4 - core index']
  #allocation1 [shape = 'u32[72,128]{1,0:T(1,128)}', space=vmem, size = 0x9000, scoped, tag = 'internal scratch']
  #allocation13 [shape = 's32[]', space=sflag, size = 0x4, offset = 0, fixed_abs, tag = 'sflag constant byte address 0x0 - dummy sync flag']
  %s0 = inlined_call_operand.hbm [shape: f32[16,128], index: 0, kind: input, shape index: {}]
  %s1 = inlined_call_operand.hbm [shape: bf16[16,64,128], index: 1, kind: input, shape index: {}]
  %s2 = inlined_call_operand.hbm [shape: bf16[128,128], index: 2, kind: input, shape index: {}]
  %s3 = inlined_call_operand.vmem [shape: f32[1,128], index: 3, kind: input, shape index: {}]
  %s4 = inlined_call_operand.hbm [shape: bf16[128,128], index: 4, kind: input, shape index: {}]
  %s5 = inlined_call_operand.vmem [shape: f32[1,128], index: 5, kind: input, shape index: {}]
  %s6 = inlined_call_operand.vmem [shape: f32[1,128], index: 6, kind: input, shape index: {}]
  %s7 = inlined_call_operand.vmem [shape: f32[1,128], index: 7, kind: input, shape index: {}]
  %s8 = inlined_call_operand.hbm [shape: f32[16,128], index: 8, kind: output, shape index: {0}]
  %s9 = inlined_call_operand.hbm [shape: f32[16,128], index: 9, kind: output, shape index: {1}]
  %10 = xla_tuple %s8, %s9
  %s11 = sld [smem:[#allocation0]]
  $region97: #{tpu_custom_call.1} parent=0
    _
  %s13 = ssub.s32 1, %s11
  %s14 = scalar_select 0, %s13, %s11
  $region1: #{tpu_custom_call.1} parent=0
    #allocation2 [shape = 'u8[8192]{0}', space=vmem, size = 0x2000, scoped, tag = 'input window, operand 0']
    #allocation3 [shape = 's32[2]{0}', space=sflag, size = 0x8, scoped, tag = 'scoped memory for tpu_custom_call.1']
    #allocation4 [shape = 's32[2]{0}', space=sflag, size = 0x8, scoped, tag = 'scoped memory for tpu_custom_call.1']
    #allocation5 [shape = 'u8[65536]{0}', space=vmem, size = 0x10000, scoped, tag = 'input window, operand 1']
    #allocation6 [shape = 's32[2]{0}', space=sflag, size = 0x8, scoped, tag = 'scoped memory for tpu_custom_call.1']
    #allocation7 [shape = 'u8[32768]{0}', space=vmem, size = 0x8000, scoped, tag = 'input window, operand 2, single buffered']
    #allocation8 [shape = 'u8[32768]{0}', space=vmem, size = 0x8000, scoped, tag = 'input window, operand 4, single buffered']
    #allocation9 [shape = 's32[1]{0}', space=sflag, size = 0x4, scoped, tag = 'scoped memory for tpu_custom_call.1']
    #allocation10 [shape = 'u8[8192]{0}', space=vmem, size = 0x2000, scoped, tag = 'output window, operand 0']
    #allocation11 [shape = 'u8[8192]{0}', space=vmem, size = 0x2000, scoped, tag = 'output window, operand 1']
    #allocation12 [shape = 's32[2]{0}', space=sflag, size = 0x8, scoped, tag = 'scoped memory for tpu_custom_call.1']
    %15 = vsyncpa [#allocation3], 0
    %s16 = scalar_lea.sflag [#allocation3], 1
    %17 = vsyncpa %s16, 0
    %18 = vsyncpa [#allocation6], 0
    %s19 = scalar_lea.sflag [#allocation6], 1
    %20 = vsyncpa %s19, 0
    %21 = vsyncpa [#allocation9], 0
    %22 = vsyncpa [#allocation4], 0
    %s23 = scalar_lea.sflag [#allocation4], 1
    %24 = vsyncpa %s23, 0
    %25 = vsyncpa [#allocation12], 0
    %s26 = scalar_lea.sflag [#allocation12], 1
    %27 = vsyncpa %s26, 0
    loop: start=0, step=1, limit=10
    $region2: #{tpu_custom_call.1} parent=1 // loop_pre_header
      _
    $region3: #{tpu_custom_call.1} parent=1 // loop_header
      %s29 = sphi 0, %s33
      %p30 = scmp.ge.s32.totalorder %s29, 10
      %s36 = sphi 0, %s48
      %s37 = sphi 0, %s44
      %s38 = sphi 0, %s36
      %s39 = sphi 0, %s37
      %s40 = sphi 0, %s38
      %s41 = sphi 0, %s39
      %s51 = sphi 0, %s53
      %s54 = sphi 0, %s51
      %s55 = sphi 0, %s54
      %s71 = sphi 0, %s55
      %s79 = sphi 0, %s81
      %s82 = sphi 0, %s79
      %s83 = sphi 0, %s82
      %s99 = sphi 0, %s83
      %s103 = sphi 0, %s103
      %s105 = sphi 0, %s103
      %s106 = sphi 0, %s105
      %s120 = sphi 0, %s106
      %s124 = sphi 0, %s124
      %s126 = sphi 0, %s124
      %s127 = sphi 0, %s126
      %s141 = sphi 0, %s127
      %s145 = sphi 0, %s145
      %s147 = sphi 0, %s145
      %s148 = sphi 0, %s147
      %s162 = sphi 0, %s148
      %s166 = sphi 0, %s166
      %s168 = sphi 0, %s166
      %s169 = sphi 0, %s168
      %s183 = sphi 0, %s169
      %s187 = sphi 0, %s187
      %s189 = sphi 0, %s187
      %s190 = sphi 0, %s189
      %s204 = sphi 0, %s190
      %s208 = sphi 0, %s208
      %s210 = sphi 0, %s208
      %s211 = sphi 0, %s210
      %s225 = sphi 0, %s211
      %s231 = sphi 0, %s233
      %s234 = sphi 0, %s231
      %s235 = sphi 0, %s234
      %s251 = sphi 0, %s235
      %s257 = sphi 0, %s259
      %s260 = sphi 0, %s257
      %s261 = sphi 0, %s260
      %s277 = sphi 0, %s261
    $region4: #{tpu_custom_call.1} parent=1 // loop_header_branch
      %32 = sbr.rel (%p30) target = $region8
    $region5: #{tpu_custom_call.1} parent=1 // loop_body
      %s34 = ssub.s32 %s29, 1
      %s35 = ssub.s32 %s29, 2
      %s42 = sadd.s32 1, %s37
      %p43 = scmp.ge.s32.totalorder %s42, 4
      %s44 = scalar_select %p43, 0, %s42
      %s45 = sadd.s32 1, %s36
      %s46 = scalar_select %p43, %s45, %s36
      %p47 = scmp.ge.s32.totalorder %s46, 2
      %s48 = scalar_select %p47, 0, %s46
      %s49 = ssub.s32 %s36, %s48
      %p50 = scmp.eq.s32.totalorder %s49, 0
      %s52 = sadd.s32 %s51, 1
      %s53 = scalar_select %p50, %s51, %s52
      %p56 = pneg %p50
      %p57 = scmp.eq.s32.totalorder %s29, 7
      %p58 = por %p56, %p57
      %p59 = scmp.ne.s32.totalorder %s51, %s54
      %p60 = scmp.eq.s32.totalorder %s29, 0
      %p61 = por %p59, %p60
      %p62 = scmp.ne.s32.totalorder %s51, %s54
      %p63 = scmp.eq.s32.totalorder %s34, 7
      %p64 = por %p62, %p63
      %p65 = scmp.ne.s32.totalorder %s54, %s55
      %p66 = scmp.eq.s32.totalorder %s34, 0
      %p67 = por %p65, %p66
      %p68 = scmp.ne.s32.totalorder %s54, %s55
      %p69 = scmp.eq.s32.totalorder %s35, 7
      %p70 = por %p68, %p69
      %p72 = scmp.ne.s32.totalorder %s55, %s71
      %p73 = scmp.eq.s32.totalorder %s35, 0
      %p74 = por %p72, %p73
      %s75 = ssub.s32 %s36, %s48
      %s76 = ssub.s32 %s37, %s44
      %s77 = sor.u32 %s75, %s76
      %p78 = scmp.eq.s32.totalorder %s77, 0
      %s80 = sadd.s32 %s79, 1
      %s81 = scalar_select %p78, %s79, %s80
      %p84 = pneg %p78
      %p85 = scmp.eq.s32.totalorder %s29, 7
      %p86 = por %p84, %p85
      %p87 = scmp.ne.s32.totalorder %s79, %s82
      %p88 = scmp.eq.s32.totalorder %s29, 0
      %p89 = por %p87, %p88
      %p90 = scmp.ne.s32.totalorder %s79, %s82
      %p91 = scmp.eq.s32.totalorder %s34, 7
      %p92 = por %p90, %p91
      %p93 = scmp.ne.s32.totalorder %s82, %s83
      %p94 = scmp.eq.s32.totalorder %s34, 0
      %p95 = por %p93, %p94
      %p96 = scmp.ne.s32.totalorder %s82, %s83
      %p97 = scmp.eq.s32.totalorder %s35, 7
      %p98 = por %p96, %p97
      %p100 = scmp.ne.s32.totalorder %s83, %s99
      %p101 = scmp.eq.s32.totalorder %s35, 0
      %p102 = por %p100, %p101
      %s104 = sadd.s32 %s103, 1
      %p107 = scmp.eq.s32.totalorder %s29, 7
      %p108 = scmp.ne.s32.totalorder %s103, %s105
      %p109 = scmp.eq.s32.totalorder %s29, 0
      %p110 = por %p108, %p109
      %p111 = scmp.ne.s32.totalorder %s103, %s105
      %p112 = scmp.eq.s32.totalorder %s34, 7
      %p113 = por %p111, %p112
      %p114 = scmp.ne.s32.totalorder %s105, %s106
      %p115 = scmp.eq.s32.totalorder %s34, 0
      %p116 = por %p114, %p115
      %p117 = scmp.ne.s32.totalorder %s105, %s106
      %p118 = scmp.eq.s32.totalorder %s35, 7
      %p119 = por %p117, %p118
      %p121 = scmp.ne.s32.totalorder %s106, %s120
      %p122 = scmp.eq.s32.totalorder %s35, 0
      %p123 = por %p121, %p122
      %s125 = sadd.s32 %s124, 1
      %p128 = scmp.eq.s32.totalorder %s29, 7
      %p129 = scmp.ne.s32.totalorder %s124, %s126
      %p130 = scmp.eq.s32.totalorder %s29, 0
      %p131 = por %p129, %p130
      %p132 = scmp.ne.s32.totalorder %s124, %s126
      %p133 = scmp.eq.s32.totalorder %s34, 7
      %p134 = por %p132, %p133
      %p135 = scmp.ne.s32.totalorder %s126, %s127
      %p136 = scmp.eq.s32.totalorder %s34, 0
      %p137 = por %p135, %p136
      %p138 = scmp.ne.s32.totalorder %s126, %s127
      %p139 = scmp.eq.s32.totalorder %s35, 7
      %p140 = por %p138, %p139
      %p142 = scmp.ne.s32.totalorder %s127, %s141
      %p143 = scmp.eq.s32.totalorder %s35, 0
      %p144 = por %p142, %p143
      %s146 = sadd.s32 %s145, 1
      %p149 = scmp.eq.s32.totalorder %s29, 7
      %p150 = scmp.ne.s32.totalorder %s145, %s147
      %p151 = scmp.eq.s32.totalorder %s29, 0
      %p152 = por %p150, %p151
      %p153 = scmp.ne.s32.totalorder %s145, %s147
      %p154 = scmp.eq.s32.totalorder %s34, 7
      %p155 = por %p153, %p154
      %p156 = scmp.ne.s32.totalorder %s147, %s148
      %p157 = scmp.eq.s32.totalorder %s34, 0
      %p158 = por %p156, %p157
      %p159 = scmp.ne.s32.totalorder %s147, %s148
      %p160 = scmp.eq.s32.totalorder %s35, 7
      %p161 = por %p159, %p160
      %p163 = scmp.ne.s32.totalorder %s148, %s162
      %p164 = scmp.eq.s32.totalorder %s35, 0
      %p165 = por %p163, %p164
      %s167 = sadd.s32 %s166, 1
      %p170 = scmp.eq.s32.totalorder %s29, 7
      %p171 = scmp.ne.s32.totalorder %s166, %s168
      %p172 = scmp.eq.s32.totalorder %s29, 0
      %p173 = por %p171, %p172
      %p174 = scmp.ne.s32.totalorder %s166, %s168
      %p175 = scmp.eq.s32.totalorder %s34, 7
      %p176 = por %p174, %p175
      %p177 = scmp.ne.s32.totalorder %s168, %s169
      %p178 = scmp.eq.s32.totalorder %s34, 0
      %p179 = por %p177, %p178
      %p180 = scmp.ne.s32.totalorder %s168, %s169
      %p181 = scmp.eq.s32.totalorder %s35, 7
      %p182 = por %p180, %p181
      %p184 = scmp.ne.s32.totalorder %s169, %s183
      %p185 = scmp.eq.s32.totalorder %s35, 0
      %p186 = por %p184, %p185
      %s188 = sadd.s32 %s187, 1
      %p191 = scmp.eq.s32.totalorder %s29, 7
      %p192 = scmp.ne.s32.totalorder %s187, %s189
      %p193 = scmp.eq.s32.totalorder %s29, 0
      %p194 = por %p192, %p193
      %p195 = scmp.ne.s32.totalorder %s187, %s189
      %p196 = scmp.eq.s32.totalorder %s34, 7
      %p197 = por %p195, %p196
      %p198 = scmp.ne.s32.totalorder %s189, %s190
      %p199 = scmp.eq.s32.totalorder %s34, 0
      %p200 = por %p198, %p199
      %p201 = scmp.ne.s32.totalorder %s189, %s190
      %p202 = scmp.eq.s32.totalorder %s35, 7
      %p203 = por %p201, %p202
      %p205 = scmp.ne.s32.totalorder %s190, %s204
      %p206 = scmp.eq.s32.totalorder %s35, 0
      %p207 = por %p205, %p206
      %s209 = sadd.s32 %s208, 1
      %p212 = scmp.eq.s32.totalorder %s29, 7
      %p213 = scmp.ne.s32.totalorder %s208, %s210
      %p214 = scmp.eq.s32.totalorder %s29, 0
      %p215 = por %p213, %p214
      %p216 = scmp.ne.s32.totalorder %s208, %s210
      %p217 = scmp.eq.s32.totalorder %s34, 7
      %p218 = por %p216, %p217
      %p219 = scmp.ne.s32.totalorder %s210, %s211
      %p220 = scmp.eq.s32.totalorder %s34, 0
      %p221 = por %p219, %p220
      %p222 = scmp.ne.s32.totalorder %s210, %s211
      %p223 = scmp.eq.s32.totalorder %s35, 7
      %p224 = por %p222, %p223
      %p226 = scmp.ne.s32.totalorder %s211, %s225
      %p227 = scmp.eq.s32.totalorder %s35, 0
      %p228 = por %p226, %p227
      %s229 = ssub.s32 %s36, %s48
      %p230 = scmp.eq.s32.totalorder %s229, 0
      %s232 = sadd.s32 %s231, 1
      %s233 = scalar_select %p230, %s231, %s232
      %p236 = pneg %p230
      %p237 = scmp.eq.s32.totalorder %s29, 7
      %p238 = por %p236, %p237
      %p239 = scmp.ne.s32.totalorder %s231, %s234
      %p240 = scmp.eq.s32.totalorder %s29, 0
      %p241 = por %p239, %p240
      %p242 = scmp.ne.s32.totalorder %s231, %s234
      %p243 = scmp.eq.s32.totalorder %s34, 7
      %p244 = por %p242, %p243
      %p245 = scmp.ne.s32.totalorder %s234, %s235
      %p246 = scmp.eq.s32.totalorder %s34, 0
      %p247 = por %p245, %p246
      %p248 = scmp.ne.s32.totalorder %s234, %s235
      %p249 = scmp.eq.s32.totalorder %s35, 7
      %p250 = por %p248, %p249
      %p252 = scmp.ne.s32.totalorder %s235, %s251
      %p253 = scmp.eq.s32.totalorder %s35, 0
      %p254 = por %p252, %p253
      %s255 = ssub.s32 %s36, %s48
      %p256 = scmp.eq.s32.totalorder %s255, 0
      %s258 = sadd.s32 %s257, 1
      %s259 = scalar_select %p256, %s257, %s258
      %p262 = pneg %p256
      %p263 = scmp.eq.s32.totalorder %s29, 7
      %p264 = por %p262, %p263
      %p265 = scmp.ne.s32.totalorder %s257, %s260
      %p266 = scmp.eq.s32.totalorder %s29, 0
      %p267 = por %p265, %p266
      %p268 = scmp.ne.s32.totalorder %s257, %s260
      %p269 = scmp.eq.s32.totalorder %s34, 7
      %p270 = por %p268, %p269
      %p271 = scmp.ne.s32.totalorder %s260, %s261
      %p272 = scmp.eq.s32.totalorder %s34, 0
      %p273 = por %p271, %p272
      %p274 = scmp.ne.s32.totalorder %s260, %s261
      %p275 = scmp.eq.s32.totalorder %s35, 7
      %p276 = por %p274, %p275
      %p278 = scmp.ne.s32.totalorder %s261, %s277
      %p279 = scmp.eq.s32.totalorder %s35, 0
      %p280 = por %p278, %p279
      %p281 = scmp.le.s32.totalorder 1, %s29
      %p282 = scmp.lt.s32.totalorder %s29, 9
      %p283 = pnand %p281, %p282
      %p284 = pneg %p283
      // Predicated region
      $region9: #{tpu_custom_call.1} parent=5 // pred_check
        _
      $region10: #{tpu_custom_call.1} parent=5 // pred_check_branch
        %286 = sbr.rel (%p283) target = $region12
      $region11: #{tpu_custom_call.1} parent=5 // pred_region
        %s287 = ssub.s32 %s29, 1
        // Predicated region
        $region13: #{tpu_custom_call.1} parent=11 // pred_check
          %p288 = pneg %p116
        $region14: #{tpu_custom_call.1} parent=11 // pred_check_branch
          %290 = sbr.rel (%p288) target = $region16
        $region15: #{tpu_custom_call.1} parent=11 // pred_region
          %292 = vsyncadd [#allocation6], 0
          %s293 = sshll.u32 %s2, 4
          %s294 = int_to_ptr.hbm [resolvable:$true] %s293
          %s295 = sshll.u32 [#allocation7], 4
          %s296 = int_to_ptr.vmem [resolvable:$true] %s295
          %301 = dma.hbm_to_vmem [thread:$0]  %s294, 1024, %s296, [#allocation6], 64, 64, 4
        $region16: #{tpu_custom_call.1} parent=11 // pred_fallthru
          _
        // Predicated region
        $region17: #{tpu_custom_call.1} parent=11 // pred_check
          %p302 = pneg %p137
        $region18: #{tpu_custom_call.1} parent=11 // pred_check_branch
          %304 = sbr.rel (%p302) target = $region20
        $region19: #{tpu_custom_call.1} parent=11 // pred_region
          _
        $region20: #{tpu_custom_call.1} parent=11 // pred_fallthru
          _
        // Predicated region
        $region21: #{tpu_custom_call.1} parent=11 // pred_check
          %p305 = pneg %p158
        $region22: #{tpu_custom_call.1} parent=11 // pred_check_branch
          %307 = sbr.rel (%p305) target = $region24
        $region23: #{tpu_custom_call.1} parent=11 // pred_region
          %309 = vsyncadd [#allocation9], 0
          %s310 = sshll.u32 %s4, 4
          %s311 = int_to_ptr.hbm [resolvable:$true] %s310
          %s312 = sshll.u32 [#allocation8], 4
          %s313 = int_to_ptr.vmem [resolvable:$true] %s312
          %318 = dma.hbm_to_vmem [thread:$0]  %s311, 1024, %s313, [#allocation9], 64, 64, 4
        $region24: #{tpu_custom_call.1} parent=11 // pred_fallthru
          _
        // Predicated region
        $region25: #{tpu_custom_call.1} parent=11 // pred_check
          %p319 = pneg %p179
        $region26: #{tpu_custom_call.1} parent=11 // pred_check_branch
          %321 = sbr.rel (%p319) target = $region28
        $region27: #{tpu_custom_call.1} parent=11 // pred_region
          _
        $region28: #{tpu_custom_call.1} parent=11 // pred_fallthru
          _
        // Predicated region
        $region29: #{tpu_custom_call.1} parent=11 // pred_check
          %p322 = pneg %p200
        $region30: #{tpu_custom_call.1} parent=11 // pred_check_branch
          %324 = sbr.rel (%p322) target = $region32
        $region31: #{tpu_custom_call.1} parent=11 // pred_region
          _
        $region32: #{tpu_custom_call.1} parent=11 // pred_fallthru
          _
        // Predicated region
        $region33: #{tpu_custom_call.1} parent=11 // pred_check
          %p325 = pneg %p221
        $region34: #{tpu_custom_call.1} parent=11 // pred_check_branch
          %327 = sbr.rel (%p325) target = $region36
        $region35: #{tpu_custom_call.1} parent=11 // pred_region
          _
        $region36: #{tpu_custom_call.1} parent=11 // pred_fallthru
          _
      $region12: #{tpu_custom_call.1} parent=5 // pred_fallthru
        _
      %p328 = scmp.lt.s32.totalorder %s29, 8
      // Predicated region
      $region37: #{tpu_custom_call.1} parent=5 // pred_check
        %p329 = pneg %p328
      $region38: #{tpu_custom_call.1} parent=5 // pred_check_branch
        %331 = sbr.rel (%p329) target = $region40
      $region39: #{tpu_custom_call.1} parent=5 // pred_region
        // Predicated region
        $region41: #{tpu_custom_call.1} parent=39 // pred_check
          %p332 = pneg %p61
        $region42: #{tpu_custom_call.1} parent=39 // pred_check_branch
          %334 = sbr.rel (%p332) target = $region44
        $region43: #{tpu_custom_call.1} parent=39 // pred_region
          %s335 = sand.u32 %s51, 1
          %s336 = scalar_lea.sflag [#allocation3], %s335
          %s337 = sand.u32 %s51, 1
          %s338 = smul.addr %s337, 8
          %s339 = scalar_lea.vmem [#allocation2], %s338
          %341 = vsyncadd %s336, 0
          %s342 = smul.addr %s36, 8
          %s343 = scalar_lea.hbm %s0, %s342
          %s345 = sshll.u32 %s343, 4
          %s346 = int_to_ptr.hbm [resolvable:$true] %s345
          %s347 = sshll.u32 %s339, 4
          %s348 = int_to_ptr.vmem [resolvable:$true] %s347
          %350 = dma.hbm_to_vmem [thread:$0]  %s346, 128, %s348, %s336
        $region44: #{tpu_custom_call.1} parent=39 // pred_fallthru
          _
        // Predicated region
        $region45: #{tpu_custom_call.1} parent=39 // pred_check
          %p351 = pneg %p89
        $region46: #{tpu_custom_call.1} parent=39 // pred_check_branch
          %353 = sbr.rel (%p351) target = $region48
        $region47: #{tpu_custom_call.1} parent=39 // pred_region
          #allocation14 [shape = 'u32[6]{0}', space=smem, size = 0x18, scoped, tag = 'DMA stride descriptor']
          %s354 = sand.u32 %s29, 1
          %s355 = scalar_lea.sflag [#allocation6], %s354
          %s356 = sand.u32 %s79, 1
          %s357 = smul.addr %s356, 64
          %s358 = scalar_lea.vmem [#allocation5], %s357
          %s359 = smul.u32 8, %s36
          %s360 = smul.u32 2, %s37
          %362 = vsyncadd %s355, 0
          %s363 = smul.addr %s359, 8
          %s364 = sadd.s32 %s360, %s363
          %s365 = smul.addr %s364, 4
          %s366 = scalar_lea.hbm %s1, %s365
          %s368 = sshll.u32 1, 14
          %s369 = sxor.u32 4294967295, %s368
          %s371 = sld [smem:[#allocation0]]
          %s372 = sadd.s32 2, %s371
          %s374 = sshll.u32 7, 26
          %s375 = sxor.u32 4294967295, %s374
          %s376 = sand.u32 0, %s375
          %s377 = sshll.u32 %s372, 26
          %s378 = sor.u32 %s376, %s377
          %s379 = sshll.u32 %s366, 4
          %s380 = int_to_ptr.hbm [resolvable:$true] %s379
          %s381 = sshll.u32 %s358, 4
          %s382 = int_to_ptr.vmem [resolvable:$true] %s381
          %388 = sst [smem:[#allocation14]] 512
          %s389 = scalar_lea.smem [#allocation14], 1
          %390 = sst [smem:[%s389]] 128
          %s391 = scalar_lea.smem [#allocation14], 2
          %392 = sst [smem:[%s391]] 2
          %s393 = scalar_lea.smem [#allocation14], 3
          %394 = sst [smem:[%s393]] 64
          %s395 = scalar_lea.smem [#allocation14], 4
          %396 = sst [smem:[%s395]] 64
          %s397 = scalar_lea.smem [#allocation14], 5
          %398 = sst [smem:[%s397]] 4
          %400 = dma.general %s380, 1024, %s382, %s355, [#allocation13], [#allocation14], %s378, 0
        $region48: #{tpu_custom_call.1} parent=39 // pred_fallthru
          _
      $region40: #{tpu_custom_call.1} parent=5 // pred_fallthru
        _
      %p401 = scmp.le.s32.totalorder 1, %s29
      %p402 = scmp.lt.s32.totalorder %s29, 9
      %p403 = pnand %p401, %p402
      %p404 = pneg %p403
      // Predicated region
      $region49: #{tpu_custom_call.1} parent=5 // pred_check
        _
      $region50: #{tpu_custom_call.1} parent=5 // pred_check_branch
        %406 = sbr.rel (%p403) target = $region52
      $region51: #{tpu_custom_call.1} parent=5 // pred_region
        %s407 = ssub.s32 %s29, 1
        %s408 = sand.u32 %s54, 1
        %s409 = scalar_lea.sflag [#allocation3], %s408
        %s410 = sand.u32 %s54, 1
        %s411 = smul.addr %s410, 8
        %s412 = scalar_lea.vmem [#allocation2], %s411
        // Predicated region
        $region53: #{tpu_custom_call.1} parent=51 // pred_check
          %p413 = pneg %p67
        $region54: #{tpu_custom_call.1} parent=51 // pred_check_branch
          %415 = sbr.rel (%p413) target = $region56
        $region55: #{tpu_custom_call.1} parent=51 // pred_region
          %417 = dma.done %s409, 128
        $region56: #{tpu_custom_call.1} parent=51 // pred_fallthru
          _
        %s418 = sand.u32 %s34, 1
        %s419 = scalar_lea.sflag [#allocation6], %s418
        %s420 = sand.u32 %s82, 1
        %s421 = smul.addr %s420, 64
        %s422 = scalar_lea.vmem [#allocation5], %s421
        // Predicated region
        $region57: #{tpu_custom_call.1} parent=51 // pred_check
          %p423 = pneg %p95
        $region58: #{tpu_custom_call.1} parent=51 // pred_check_branch
          %425 = sbr.rel (%p423) target = $region60
        $region59: #{tpu_custom_call.1} parent=51 // pred_region
          %427 = dma.done %s419, 1024
        $region60: #{tpu_custom_call.1} parent=51 // pred_fallthru
          _
        // Predicated region
        $region61: #{tpu_custom_call.1} parent=51 // pred_check
          %p428 = pneg %p116
        $region62: #{tpu_custom_call.1} parent=51 // pred_check_branch
          %430 = sbr.rel (%p428) target = $region64
        $region63: #{tpu_custom_call.1} parent=51 // pred_region
          %432 = dma.done [#allocation6], 1024
        $region64: #{tpu_custom_call.1} parent=51 // pred_fallthru
          _
        // Predicated region
        $region65: #{tpu_custom_call.1} parent=51 // pred_check
          %p433 = pneg %p158
        $region66: #{tpu_custom_call.1} parent=51 // pred_check_branch
          %435 = sbr.rel (%p433) target = $region68
        $region67: #{tpu_custom_call.1} parent=51 // pred_region
          %437 = dma.done [#allocation9], 1024
        $region68: #{tpu_custom_call.1} parent=51 // pred_fallthru
          _
        %s438 = sand.u32 %s54, 1
        %s439 = scalar_lea.sflag [#allocation3], %s438
        %s440 = sand.u32 %s54, 1
        %s441 = smul.addr %s440, 8
        %s442 = scalar_lea.vmem [#allocation2], %s441
        %p443 = pneg %p67
        %p444 = pneg %p64
        %s445 = sand.u32 %s34, 1
        %s446 = scalar_lea.sflag [#allocation6], %s445
        %s447 = sand.u32 %s82, 1
        %s448 = smul.addr %s447, 64
        %s449 = scalar_lea.vmem [#allocation5], %s448
        %p450 = pneg %p95
        %p451 = pneg %p92
        %p452 = pneg %p116
        %p453 = pneg %p113
        %p454 = pneg %p137
        %p455 = pneg %p134
        %p456 = pneg %p158
        %p457 = pneg %p155
        %p458 = pneg %p179
        %p459 = pneg %p176
        %p460 = pneg %p200
        %p461 = pneg %p197
        %p462 = pneg %p221
        %p463 = pneg %p218
        %p464 = pneg %p247
        %p465 = pneg %p244
        %s466 = sand.u32 %s234, 1
        %s467 = scalar_lea.sflag [#allocation4], %s466
        %s468 = sand.u32 %s234, 1
        %s469 = smul.addr %s468, 8
        %s470 = scalar_lea.vmem [#allocation10], %s469
        %p471 = pneg %p273
        %p472 = pneg %p270
        %s473 = sand.u32 %s260, 1
        %s474 = scalar_lea.sflag [#allocation12], %s473
        %s475 = sand.u32 %s260, 1
        %s476 = smul.addr %s475, 8
        %s477 = scalar_lea.vmem [#allocation11], %s476
        %s478 = smul.u32 8, %s38
        %s479 = smul.u32 2, %s39
        %p480 = scmp.eq.s32.totalorder %s39, 0
        // Predicated region
        $region69: #{tpu_custom_call.1} parent=51 // pred_check
          %p481 = pneg %p480
        $region70: #{tpu_custom_call.1} parent=51 // pred_check_branch
          %483 = sbr.rel (%p481) target = $region72
        $region71: #{tpu_custom_call.1} parent=51 // pred_region
          %484 = vst [vmem:[%s470] sm:$0xff] 0.0
          %v485 = vld [vmem:[%s412] sm:$0xff]
          %v486 = vld [vmem:[#allocation7] sm:$0xf]
          %v487 = vld [vmem:[#allocation7 + $0x4] sm:$0xf]
          %v488 = vld [vmem:[#allocation7 + $0x8] sm:$0xf]
          %v489 = vld [vmem:[#allocation7 + $0xc] sm:$0xf]
          %v490 = vld [vmem:[#allocation7 + $0x10] sm:$0xf]
          %v491 = vld [vmem:[#allocation7 + $0x14] sm:$0xf]
          %v492 = vld [vmem:[#allocation7 + $0x18] sm:$0xf]
          %v493 = vld [vmem:[#allocation7 + $0x1c] sm:$0xf]
          %v494 = vld [vmem:[#allocation7 + $0x20] sm:$0xf]
          %v495 = vld [vmem:[#allocation7 + $0x24] sm:$0xf]
          %v496 = vld [vmem:[#allocation7 + $0x28] sm:$0xf]
          %v497 = vld [vmem:[#allocation7 + $0x2c] sm:$0xf]
          %v498 = vld [vmem:[#allocation7 + $0x30] sm:$0xf]
          %v499 = vld [vmem:[#allocation7 + $0x34] sm:$0xf]
          %v500 = vld [vmem:[#allocation7 + $0x38] sm:$0xf]
          %v501 = vld [vmem:[#allocation7 + $0x3c] sm:$0xf]
          %v502 = vld [vmem:[%s3] sm:$0x1]
          %v503 = vld [vmem:[#allocation8] sm:$0xf]
          %v504 = vld [vmem:[#allocation8 + $0x4] sm:$0xf]
          %v505 = vld [vmem:[#allocation8 + $0x8] sm:$0xf]
          %v506 = vld [vmem:[#allocation8 + $0xc] sm:$0xf]
          %v507 = vld [vmem:[#allocation8 + $0x10] sm:$0xf]
          %v508 = vld [vmem:[#allocation8 + $0x14] sm:$0xf]
          %v509 = vld [vmem:[#allocation8 + $0x18] sm:$0xf]
          %v510 = vld [vmem:[#allocation8 + $0x1c] sm:$0xf]
          %v511 = vld [vmem:[#allocation8 + $0x20] sm:$0xf]
          %v512 = vld [vmem:[#allocation8 + $0x24] sm:$0xf]
          %v513 = vld [vmem:[#allocation8 + $0x28] sm:$0xf]
          %v514 = vld [vmem:[#allocation8 + $0x2c] sm:$0xf]
          %v515 = vld [vmem:[#allocation8 + $0x30] sm:$0xf]
          %v516 = vld [vmem:[#allocation8 + $0x34] sm:$0xf]
          %v517 = vld [vmem:[#allocation8 + $0x38] sm:$0xf]
          %v518 = vld [vmem:[#allocation8 + $0x3c] sm:$0xf]
          %v519 = vld [vmem:[%s5] sm:$0x1]
          %v520 = vld [vmem:[%s6] sm:$0x1]
          %v521 = vld [vmem:[%s7] sm:$0x1]
          %v522 = vpack.c.bf16 %v485, %v485
          %v524 = vperm.slane %v502, 0
          %v542 = vunpack.c.l.b16 %v486
          %v543 = vunpack.c.l.b16 %v487
          %v544 = vunpack.c.l.b16 %v488
          %v545 = vunpack.c.l.b16 %v489
          %v546 = vunpack.c.l.b16 %v490
          %v547 = vunpack.c.l.b16 %v491
          %v548 = vunpack.c.l.b16 %v492
          %v549 = vunpack.c.l.b16 %v493
          %v550 = vunpack.c.l.b16 %v494
          %v551 = vunpack.c.l.b16 %v495
          %v552 = vunpack.c.l.b16 %v496
          %v553 = vunpack.c.l.b16 %v497
          %v554 = vunpack.c.l.b16 %v498
          %v555 = vunpack.c.l.b16 %v499
          %v556 = vunpack.c.l.b16 %v500
          %v557 = vunpack.c.l.b16 %v501
          %v558 = vpack.c.b16 %v543, %v542
          %v559 = vpack.c.b16 %v545, %v544
          %v560 = vpack.c.b16 %v547, %v546
          %v561 = vpack.c.b16 %v549, %v548
          %v562 = vpack.c.b16 %v551, %v550
          %v563 = vpack.c.b16 %v553, %v552
          %v564 = vpack.c.b16 %v555, %v554
          %v565 = vpack.c.b16 %v557, %v556
          %574 = vmatpush.bf16.msra.mxu0 %v565
          %575 = vmatpush.bf16.msra.mxu0 %v564
          %576 = vmatpush.bf16.msra.mxu0 %v563
          %577 = vmatpush.bf16.msra.mxu0 %v562
          %578 = vmatpush.bf16.msra.mxu0 %v561
          %579 = vmatpush.bf16.msra.mxu0 %v560
          %580 = vmatpush.bf16.msra.mxu0 %v559
          %581 = vmatpush.bf16.msra.mxu0 %v558
          %582 = vmatmul.bf16.gmra.mxu0 %v522
          %v583 = vpop.f32.mrf.mxu0
          %v584 = vadd.f32 %v524, %v583
          %v585 = vpop.f32.mrf.mxu0
          %586 = vdwg.mxu0
          %v587 = vmul.f32 %v584, 0.5
          %v588 = vmul.f32 %v584, 0.70710677
          %v589 = vand.u32 2147483647, %v588
          %v590 = vmul.f32 %v589, 0.3275911
          %v591 = vadd.f32 %v590, 1.0
          %v592 = vrcp.pop %v591
          %v593 = vmul.f32 %v591, %v592
          %v594 = vsub.f32 1.0, %v593
          %v595 = vmul.f32 %v592, %v594
          %v596 = vadd.f32 %v592, %v595
          %vm597 = vweird.f32 %v591
          %vm598 = vweird.f32 %v592
          %vm599 = vmor %vm597, %vm598
          %v600 = vsel %vm599, %v592, %v596
          %v601 = vand.u32 2147483647, %v591
          %vm602 = vcmp.eq.f32.partialorder %v601, 8.507059e+37
          %v603 = vand.u32 %v591, 2147483648
          %v604 = vor.u32 1.1754944e-38, %v603
          %v605 = vsel %vm602, %v604, %v600
          %v606 = vmul.f32 1.0, %v605
          %v607 = vmul.f32 %v606, 1.0614054
          %v608 = vadd.f32 %v607, -1.4531521
          %v609 = vmul.f32 %v608, %v606
          %v610 = vadd.f32 %v609, 1.4214138
          %v611 = vmul.f32 %v610, %v606
          %v612 = vadd.f32 %v611, -0.28449672
          %v613 = vmul.f32 %v612, %v606
          %v614 = vadd.f32 %v613, 0.2548296
          %v615 = vmul.f32 %v614, %v606
          %v616 = vsub.f32 0.0, %v589
          %v617 = vmul.f32 %v616, %v589
          %v618 = vmul.f32 %v617, 1.442695
          %v619 = vpow.pop %v618
          %v620 = vmul.f32 %v615, %v619
          %v621 = vsub.f32 1.0, %v620
          %vm622 = vcmp.ge.f32.partialorder %v588, 0.0
          %v623 = vsub.f32 0.0, %v621
          %v624 = vsel %vm622, %v621, %v623
          %v625 = vadd.f32 %v624, 1.0
          %v626 = vmul.f32 %v587, %v625
          %v627 = vpack.c.bf16 %v626, %v626
          %v629 = vperm.slane %v519, 0
          %v647 = vunpack.c.l.b16 %v503
          %v648 = vunpack.c.l.b16 %v504
          %v649 = vunpack.c.l.b16 %v505
          %v650 = vunpack.c.l.b16 %v506
          %v651 = vunpack.c.l.b16 %v507
          %v652 = vunpack.c.l.b16 %v508
          %v653 = vunpack.c.l.b16 %v509
          %v654 = vunpack.c.l.b16 %v510
          %v655 = vunpack.c.l.b16 %v511
          %v656 = vunpack.c.l.b16 %v512
          %v657 = vunpack.c.l.b16 %v513
          %v658 = vunpack.c.l.b16 %v514
          %v659 = vunpack.c.l.b16 %v515
          %v660 = vunpack.c.l.b16 %v516
          %v661 = vunpack.c.l.b16 %v517
          %v662 = vunpack.c.l.b16 %v518
          %v663 = vpack.c.b16 %v648, %v647
          %v664 = vpack.c.b16 %v650, %v649
          %v665 = vpack.c.b16 %v652, %v651
          %v666 = vpack.c.b16 %v654, %v653
          %v667 = vpack.c.b16 %v656, %v655
          %v668 = vpack.c.b16 %v658, %v657
          %v669 = vpack.c.b16 %v660, %v659
          %v670 = vpack.c.b16 %v662, %v661
          %679 = vmatpush.bf16.msra.mxu0 %v670
          %680 = vmatpush.bf16.msra.mxu0 %v669
          %681 = vmatpush.bf16.msra.mxu0 %v668
          %682 = vmatpush.bf16.msra.mxu0 %v667
          %683 = vmatpush.bf16.msra.mxu0 %v666
          %684 = vmatpush.bf16.msra.mxu0 %v665
          %685 = vmatpush.bf16.msra.mxu0 %v664
          %686 = vmatpush.bf16.msra.mxu0 %v663
          %687 = vmatmul.bf16.gmra.mxu0 %v627
          %v688 = vpop.f32.mrf.mxu0
          %v689 = vadd.f32 %v629, %v688
          %v690 = vpop.f32.mrf.mxu0
          %691 = vdwg.mxu0
          %v692 = vadd.f32 %v689, %v584
          %693 = vadd.xlane.f32.xlu0 %v692
          %v694 = vpop.xlane.xlu0 %693
          %v695 = vrcp.pop 128.0
          %v696 = vmul.f32 128.0, %v695
          %v697 = vsub.f32 1.0, %v696
          %v698 = vmul.f32 %v695, %v697
          %v699 = vadd.f32 %v695, %v698
          %vm700 = vweird.f32 %v695
          %v701 = vsel %vm700, %v695, %v699
          %v702 = vmul.f32 %v694, %v701
          %v703 = vsub.f32 %v692, %v702
          %v704 = vmul.f32 %v703, %v703
          %705 = vadd.xlane.f32.xlu0 %v704
          %v706 = vpop.xlane.xlu0 %705
          %v707 = vmul.f32 %v706, %v701
          %v708 = vadd.f32 %v707, 1e-05
          %v709 = vrsqrt.pop %v708
          %v710 = vmul.f32 %v709, %v708
          %v711 = vmul.f32 %v710, %v709
          %v712 = vmul.f32 0.5, %v711
          %v713 = vsub.f32 1.5, %v712
          %v714 = vmul.f32 %v709, %v713
          %vm715 = vweird.f32 %v708
          %vm716 = vweird.f32 %v709
          %vm717 = vmor %vm715, %vm716
          %v718 = vsel %vm717, %v709, %v714
          %v719 = vmul.f32 %v703, %v718
          %v721 = vperm.slane %v520, 0
          %v723 = vmul.f32 %v719, %v721
          %v725 = vperm.slane %v521, 0
          %v727 = vadd.f32 %v723, %v725
          %728 = vst [vmem:[%s477] sm:$0xff] %v727
        $region72: #{tpu_custom_call.1} parent=51 // pred_fallthru
          _
        %v729 = vld [vmem:[%s470] sm:$0xff]
        %v730 = vld [vmem:[%s422] sm:$0xf]
        %v731 = vld [vmem:[%s422 + $0x4] sm:$0xf]
        %v732 = vld [vmem:[%s422 + $0x8] sm:$0xf]
        %v733 = vld [vmem:[%s422 + $0xc] sm:$0xf]
        %v734 = vld [vmem:[%s422 + $0x10] sm:$0xf]
        %v735 = vld [vmem:[%s422 + $0x14] sm:$0xf]
        %v736 = vld [vmem:[%s422 + $0x18] sm:$0xf]
        %v737 = vld [vmem:[%s422 + $0x1c] sm:$0xf]
        %v738 = vld [vmem:[%s422 + $0x20] sm:$0xf]
        %v739 = vld [vmem:[%s422 + $0x24] sm:$0xf]
        %v740 = vld [vmem:[%s422 + $0x28] sm:$0xf]
        %v741 = vld [vmem:[%s422 + $0x2c] sm:$0xf]
        %v742 = vld [vmem:[%s422 + $0x30] sm:$0xf]
        %v743 = vld [vmem:[%s422 + $0x34] sm:$0xf]
        %v744 = vld [vmem:[%s422 + $0x38] sm:$0xf]
        %v745 = vld [vmem:[%s422 + $0x3c] sm:$0xf]
        %v746 = vunpack.c.l.bf16 %v730
        %v747 = vunpack.c.l.bf16 %v731
        %v748 = vunpack.c.l.bf16 %v732
        %v749 = vunpack.c.l.bf16 %v733
        %v750 = vunpack.c.l.bf16 %v734
        %v751 = vunpack.c.l.bf16 %v735
        %v752 = vunpack.c.l.bf16 %v736
        %v753 = vunpack.c.l.bf16 %v737
        %v754 = vunpack.c.l.bf16 %v738
        %v755 = vunpack.c.l.bf16 %v739
        %v756 = vunpack.c.l.bf16 %v740
        %v757 = vunpack.c.l.bf16 %v741
        %v758 = vunpack.c.l.bf16 %v742
        %v759 = vunpack.c.l.bf16 %v743
        %v760 = vunpack.c.l.bf16 %v744
        %v761 = vunpack.c.l.bf16 %v745
        %v762 = vadd.f32 %v746, %v747
        %v763 = vrot.slane %v762, 4
        %v764 = vadd.f32 %v762, %v763
        %v765 = vrot.slane %v764, 2
        %v766 = vadd.f32 %v764, %v765
        %v767 = vrot.slane %v766, 1
        %v768 = vadd.f32 %v766, %v767
        %v769 = vadd.f32 %v748, %v749
        %v770 = vrot.slane %v769, 4
        %v771 = vadd.f32 %v769, %v770
        %v772 = vrot.slane %v771, 2
        %v773 = vadd.f32 %v771, %v772
        %v774 = vrot.slane %v773, 1
        %v775 = vadd.f32 %v773, %v774
        %v776 = vadd.f32 %v750, %v751
        %v777 = vrot.slane %v776, 4
        %v778 = vadd.f32 %v776, %v777
        %v779 = vrot.slane %v778, 2
        %v780 = vadd.f32 %v778, %v779
        %v781 = vrot.slane %v780, 1
        %v782 = vadd.f32 %v780, %v781
        %v783 = vadd.f32 %v752, %v753
        %v784 = vrot.slane %v783, 4
        %v785 = vadd.f32 %v783, %v784
        %v786 = vrot.slane %v785, 2
        %v787 = vadd.f32 %v785, %v786
        %v788 = vrot.slane %v787, 1
        %v789 = vadd.f32 %v787, %v788
        %v790 = vadd.f32 %v754, %v755
        %v791 = vrot.slane %v790, 4
        %v792 = vadd.f32 %v790, %v791
        %v793 = vrot.slane %v792, 2
        %v794 = vadd.f32 %v792, %v793
        %v795 = vrot.slane %v794, 1
        %v796 = vadd.f32 %v794, %v795
        %v797 = vadd.f32 %v756, %v757
        %v798 = vrot.slane %v797, 4
        %v799 = vadd.f32 %v797, %v798
        %v800 = vrot.slane %v799, 2
        %v801 = vadd.f32 %v799, %v800
        %v802 = vrot.slane %v801, 1
        %v803 = vadd.f32 %v801, %v802
        %v804 = vadd.f32 %v758, %v759
        %v805 = vrot.slane %v804, 4
        %v806 = vadd.f32 %v804, %v805
        %v807 = vrot.slane %v806, 2
        %v808 = vadd.f32 %v806, %v807
        %v809 = vrot.slane %v808, 1
        %v810 = vadd.f32 %v808, %v809
        %v811 = vadd.f32 %v760, %v761
        %v812 = vrot.slane %v811, 4
        %v813 = vadd.f32 %v811, %v812
        %v814 = vrot.slane %v813, 2
        %v815 = vadd.f32 %v813, %v814
        %v816 = vrot.slane %v815, 1
        %v817 = vadd.f32 %v815, %v816
        %vm826 = vcmask 1041409
        %v827 = vsel %vm826, %v775, %v768
        %vm828 = vcmask 1042434
        %v829 = vsel %vm828, %v782, %v827
        %vm830 = vcmask 1043459
        %v831 = vsel %vm830, %v789, %v829
        %vm832 = vcmask 1044484
        %v833 = vsel %vm832, %v796, %v831
        %vm834 = vcmask 1045509
        %v835 = vsel %vm834, %v803, %v833
        %vm836 = vcmask 1046534
        %v837 = vsel %vm836, %v810, %v835
        %vm838 = vcmask 1047559
        %v839 = vsel %vm838, %v817, %v837
        %v841 = vadd.f32 %v729, %v839
        %842 = vst [vmem:[%s470] sm:$0xff] %v841
        %p843 = scmp.eq.s32.totalorder %s39, 3
        // Predicated region
        $region73: #{tpu_custom_call.1} parent=51 // pred_check
          %p844 = pneg %p843
        $region74: #{tpu_custom_call.1} parent=51 // pred_check_branch
          %846 = sbr.rel (%p844) target = $region76
        $region75: #{tpu_custom_call.1} parent=51 // pred_region
          %v847 = vld [vmem:[%s470] sm:$0xff]
          %v848 = vmul.f32 %v847, 0.015625
          %849 = vst [vmem:[%s470] sm:$0xff] %v848
        $region76: #{tpu_custom_call.1} parent=51 // pred_fallthru
          _
        %s850 = sand.u32 %s234, 1
        %s851 = scalar_lea.sflag [#allocation4], %s850
        %s852 = sand.u32 %s234, 1
        %s853 = smul.addr %s852, 8
        %s854 = scalar_lea.vmem [#allocation10], %s853
        %s855 = sand.u32 %s260, 1
        %s856 = scalar_lea.sflag [#allocation12], %s855
        %s857 = sand.u32 %s260, 1
        %s858 = smul.addr %s857, 8
        %s859 = scalar_lea.vmem [#allocation11], %s858
        // Predicated region
        $region77: #{tpu_custom_call.1} parent=51 // pred_check
          %p860 = pneg %p244
        $region78: #{tpu_custom_call.1} parent=51 // pred_check_branch
          %862 = sbr.rel (%p860) target = $region80
        $region79: #{tpu_custom_call.1} parent=51 // pred_region
          %864 = vsyncadd %s851, 0
          %s865 = smul.addr %s38, 8
          %s866 = scalar_lea.hbm %s8, %s865
          %s868 = sshll.u32 %s854, 4
          %s869 = int_to_ptr.vmem [resolvable:$true] %s868
          %s870 = sshll.u32 %s866, 4
          %s871 = int_to_ptr.hbm [resolvable:$true] %s870
          %873 = dma.vmem_to_hbm [thread:$0]  %s869, 128, %s871, %s851
        $region80: #{tpu_custom_call.1} parent=51 // pred_fallthru
          _
        // Predicated region
        $region81: #{tpu_custom_call.1} parent=51 // pred_check
          %p874 = pneg %p270
        $region82: #{tpu_custom_call.1} parent=51 // pred_check_branch
          %876 = sbr.rel (%p874) target = $region84
        $region83: #{tpu_custom_call.1} parent=51 // pred_region
          %878 = vsyncadd %s856, 0
          %s879 = smul.addr %s38, 8
          %s880 = scalar_lea.hbm %s9, %s879
          %s882 = sshll.u32 %s859, 4
          %s883 = int_to_ptr.vmem [resolvable:$true] %s882
          %s884 = sshll.u32 %s880, 4
          %s885 = int_to_ptr.hbm [resolvable:$true] %s884
          %887 = dma.vmem_to_hbm [thread:$0]  %s883, 128, %s885, %s856
        $region84: #{tpu_custom_call.1} parent=51 // pred_fallthru
          _
      $region52: #{tpu_custom_call.1} parent=5 // pred_fallthru
        _
      %p888 = scmp.le.s32.totalorder 2, %s29
      // Predicated region
      $region85: #{tpu_custom_call.1} parent=5 // pred_check
        %p889 = pneg %p888
      $region86: #{tpu_custom_call.1} parent=5 // pred_check_branch
        %891 = sbr.rel (%p889) target = $region88
      $region87: #{tpu_custom_call.1} parent=5 // pred_region
        %s892 = ssub.s32 %s29, 2
        // Predicated region
        $region89: #{tpu_custom_call.1} parent=87 // pred_check
          %p893 = pneg %p250
        $region90: #{tpu_custom_call.1} parent=87 // pred_check_branch
          %895 = sbr.rel (%p893) target = $region92
        $region91: #{tpu_custom_call.1} parent=87 // pred_region
          %s896 = sand.u32 %s235, 1
          %s897 = scalar_lea.sflag [#allocation4], %s896
          %s898 = sand.u32 %s235, 1
          %s899 = smul.addr %s898, 8
          %s900 = scalar_lea.vmem [#allocation10], %s899
          %902 = dma.done %s897, 128
        $region92: #{tpu_custom_call.1} parent=87 // pred_fallthru
          _
        // Predicated region
        $region93: #{tpu_custom_call.1} parent=87 // pred_check
          %p903 = pneg %p276
        $region94: #{tpu_custom_call.1} parent=87 // pred_check_branch
          %905 = sbr.rel (%p903) target = $region96
        $region95: #{tpu_custom_call.1} parent=87 // pred_region
          %s906 = sand.u32 %s261, 1
          %s907 = scalar_lea.sflag [#allocation12], %s906
          %s908 = sand.u32 %s261, 1
          %s909 = smul.addr %s908, 8
          %s910 = scalar_lea.vmem [#allocation11], %s909
          %912 = dma.done %s907, 128
        $region96: #{tpu_custom_call.1} parent=87 // pred_fallthru
          _
      $region88: #{tpu_custom_call.1} parent=5 // pred_fallthru
        _
    $region6: #{tpu_custom_call.1} parent=1 // loop_footer
      %s33 = sadd.s32 1, %s29
    $region7: #{tpu_custom_call.1} parent=1 // loop_footer_branch
      %28 = sbr.rel target = $region3
    $region8: #{tpu_custom_call.1} parent=1 // loop_exit
      _
    %913 = vsyncpa [#allocation3], 1
    %s914 = scalar_lea.sflag [#allocation3], 1
    %915 = vsyncpa %s914, 1
    %916 = vsyncpa [#allocation6], 1
    %s917 = scalar_lea.sflag [#allocation6], 1
    %918 = vsyncpa %s917, 1
    %919 = vsyncpa [#allocation9], 1
    %920 = vsyncpa [#allocation4], 1
    %s921 = scalar_lea.sflag [#allocation4], 1
    %922 = vsyncpa %s921, 1
    %923 = vsyncpa [#allocation12], 1
    %s924 = scalar_lea.sflag [#allocation12], 1
    %925 = vsyncpa %s924, 1

</llo_original>
